<compile_context>
chip_gen: v5e
topology: v5e:2x2
jax: 0.10.0
libtpu: 0.0.40
codegen_flags: <defaults>
</compile_context>

<pallas_src>
import functools

import jax
import jax.numpy as jnp
from jax.experimental import pallas as pl
from jax.experimental.pallas import tpu as pltpu

# Logical model dims (k_groups=5, k_actions=6).
K_GROUPS = 5
K_ACTIONS = 6
RESULT = K_GROUPS * K_ACTIONS          # 30
HIDDEN = RESULT * 4                    # 120
INTER = HIDDEN * 8                     # 960

# Lane/MXU-aligned padded dims (zero padding -> exact math).
IN_P = 8
HIDDEN_P = 128
INTER_P = 1024
OUT_P = 32

# Batch tile: 128 fills an MXU pass on every generation (v5e/v6e/v7x) while
# keeping the per-step working set tiny (<1 MB) — safe for v7x's 64 MiB VMEM.
TM = 128


def _mlp_kernel(x_ref,
                w1_ref, b1_ref,
                w2_ref, b2_ref,
                w3_ref, b3_ref,
                w4_ref, b4_ref,
                out_ref):
    # Biases are (1, N) f32; read them once per grid step (no repeated
    # broadcast_in_dim emission inside the compute chain).
    b1 = b1_ref[...]
    b2 = b2_ref[...]
    b3 = b3_ref[...]
    b4 = b4_ref[...]

    # Activations/weights are bf16 (MXU-native on v6e/v7x); accumulate, add
    # bias and ReLU in f32 on the VPU, then cast back to bf16 for the next dot.
    x = x_ref[...]                                               # (TM, 8) bf16

    h = jnp.dot(x, w1_ref[...], preferred_element_type=jnp.float32) + b1
    h = jnp.maximum(h, 0.0).astype(jnp.bfloat16)                 # (TM, 128)

    h = jnp.dot(h, w2_ref[...], preferred_element_type=jnp.float32) + b2
    h = jnp.maximum(h, 0.0).astype(jnp.bfloat16)                 # (TM, 1024)

    h = jnp.dot(h, w3_ref[...], preferred_element_type=jnp.float32) + b3
    h = jnp.maximum(h, 0.0).astype(jnp.bfloat16)                 # (TM, 128)

    h = jnp.dot(h, w4_ref[...], preferred_element_type=jnp.float32) + b4

    out_ref[...] = h.astype(out_ref.dtype)                       # (TM, 32) f32


@functools.partial(jax.jit, static_argnames=("k_groups", "k_actions"))
def simple_broker_drl_forward(x, params, k_groups=K_GROUPS, k_actions=K_ACTIONS):
    """x: (B, k_groups) float32 -> (B, k_groups, k_actions) float32."""
    assert x.shape[-1] == k_groups
    B = x.shape[0]
    result_size = k_groups * k_actions

    # Pad batch to a multiple of TM and the feature dim to IN_P (zeros), bf16.
    num_tiles = pl.cdiv(B, TM)
    Bp = num_tiles * TM
    xp = jnp.zeros((Bp, IN_P), jnp.bfloat16)
    xp = xp.at[:B, :k_groups].set(x.astype(jnp.bfloat16))

    # x / out are tiled over the batch grid; weights & biases stay resident
    # in VMEM (same block every step -> DMA'd once, reused).
    def resident(shape):
        return pl.BlockSpec(shape, lambda i: (0,) * len(shape))

    in_specs = [pl.BlockSpec((TM, IN_P), lambda i: (i, 0))]
    for p in params:
        in_specs.append(resident(p.shape))

    out = pl.pallas_call(
        _mlp_kernel,
        out_shape=jax.ShapeDtypeStruct((Bp, OUT_P), jnp.float32),
        grid=(num_tiles,),
        in_specs=in_specs,
        out_specs=pl.BlockSpec((TM, OUT_P), lambda i: (i, 0)),
        compiler_params=pltpu.CompilerParams(
            dimension_semantics=("parallel",)),
    )(xp, *params)

    # Drop batch / feature padding; unfold(-1, k_actions, k_actions) with
    # step == size is a contiguous reshape.
    out = out[:B, :result_size]
    return out.reshape(B, k_groups, k_actions)


def init_params(key, k_groups=K_GROUPS, k_actions=K_ACTIONS):
    """Deterministic synthetic parameters (PyTorch-style uniform ranges).

    Returns (padded_params, logical_params):
      padded_params:  bf16 weights (in_p, out_p) / f32 biases (1, out_p),
                      zero-padded to MXU-aligned dims — fed to the kernel.
      logical_params: f32 (fan_in, fan_out) / (fan_out,) — reference only.
    """
    result_size = k_groups * k_actions
    hidden = result_size * 4
    intermediate = hidden * 8
    dims = [(k_groups, hidden, IN_P, HIDDEN_P),
            (hidden, intermediate, HIDDEN_P, INTER_P),
            (intermediate, hidden, INTER_P, HIDDEN_P),
            (hidden, result_size, HIDDEN_P, OUT_P)]

    padded, logical = [], []
    for (fan_in, fan_out, in_p, out_p) in dims:
        key, kw, kb = jax.random.split(key, 3)
        bound = 1.0 / jnp.sqrt(fan_in)
        w = jax.random.uniform(kw, (fan_in, fan_out), jnp.float32, -bound, bound)
        b = jax.random.uniform(kb, (fan_out,), jnp.float32, -bound, bound)
        logical.extend([w, b])

        wp = jnp.zeros((in_p, out_p), jnp.bfloat16)
        wp = wp.at[:fan_in, :fan_out].set(w.astype(jnp.bfloat16))
        bp = jnp.zeros((1, out_p), jnp.float32)
        bp = bp.at[0, :fan_out].set(b)
        padded.extend([wp, bp])
    return tuple(padded), tuple(logical)


if __name__ == "__main__":
    B = 8

    key = jax.random.PRNGKey(0)
    key, kx = jax.random.split(key)
    x = jax.random.normal(kx, (B, K_GROUPS), jnp.float32)

    padded_params, logical_params = init_params(jax.random.PRNGKey(0))

    out = simple_broker_drl_forward(x, padded_params)
    out = jax.block_until_ready(out)
    assert out.shape == (B, K_GROUPS, K_ACTIONS)

    # Reference 1: same bf16/f32-accumulate math in plain JAX (validates the
    # kernel + padding plumbing exactly).
    def ref_bf16(x, params):
        h = jnp.zeros((x.shape[0], IN_P), jnp.bfloat16)
        h = h.at[:, :K_GROUPS].set(x.astype(jnp.bfloat16))
        for i in range(0, 8, 2):
            w, b = params[i], params[i + 1]
            h = jnp.dot(h, w, preferred_element_type=jnp.float32) + b
            if i < 6:
                h = jnp.maximum(h, 0.0).astype(jnp.bfloat16)
        return h[:, :RESULT].reshape(x.shape[0], K_GROUPS, K_ACTIONS)

    expected = ref_bf16(x, padded_params)
    assert jnp.allclose(out, expected, atol=1e-2, rtol=1e-2)

    # Reference 2: original full-precision PyTorch semantics (loose tolerance
    # for the bf16 matmuls) — guards against any padding/layout mistakes.
    def ref_f32(x, params):
        h = x
        for i in range(0, 8, 2):
            w, b = params[i], params[i + 1]
            h = h @ w + b
            if i < 6:
                h = jnp.maximum(h, 0.0)
        return h.reshape(x.shape[0], K_GROUPS, K_ACTIONS)

    expected_f32 = ref_f32(x, logical_params)
    assert jnp.allclose(out, expected_f32, atol=0.1, rtol=0.1)

    print("KERNEL_OK")
</pallas_src>

<mosaic_0001>
module attributes {stable_mosaic.version = 11 : i64} {
  func.func @_mlp_kernel(%arg0: i32, %arg1: memref<128x8xbf16, #tpu.memory_space<vmem>>, %arg2: memref<8x128xbf16, #tpu.memory_space<vmem>>, %arg3: memref<1x128xf32, #tpu.memory_space<vmem>>, %arg4: memref<128x1024xbf16, #tpu.memory_space<vmem>>, %arg5: memref<1x1024xf32, #tpu.memory_space<vmem>>, %arg6: memref<1024x128xbf16, #tpu.memory_space<vmem>>, %arg7: memref<1x128xf32, #tpu.memory_space<vmem>>, %arg8: memref<128x32xbf16, #tpu.memory_space<vmem>>, %arg9: memref<1x32xf32, #tpu.memory_space<vmem>>, %arg10: memref<128x32xf32, #tpu.memory_space<vmem>>) attributes {dimension_semantics = [#tpu.dimension_semantics<parallel>], iteration_bounds = array<i64: 1>, scalar_prefetch = 0 : i64, scratch_operands = 0 : i64, tpu.core_type = #tpu.core_type<tc>, window_params = [{transform_indices = @transform_0, window_bounds = array<i64: 128, 8>}, {pipeline_mode = #tpu.pipeline_mode<synchronous>, transform_indices = @transform_1, window_bounds = array<i64: 8, 128>}, {pipeline_mode = #tpu.pipeline_mode<synchronous>, transform_indices = @transform_2, window_bounds = array<i64: 1, 128>}, {pipeline_mode = #tpu.pipeline_mode<synchronous>, transform_indices = @transform_3, window_bounds = array<i64: 128, 1024>}, {pipeline_mode = #tpu.pipeline_mode<synchronous>, transform_indices = @transform_4, window_bounds = array<i64: 1, 1024>}, {pipeline_mode = #tpu.pipeline_mode<synchronous>, transform_indices = @transform_5, window_bounds = array<i64: 1024, 128>}, {pipeline_mode = #tpu.pipeline_mode<synchronous>, transform_indices = @transform_6, window_bounds = array<i64: 1, 128>}, {pipeline_mode = #tpu.pipeline_mode<synchronous>, transform_indices = @transform_7, window_bounds = array<i64: 128, 32>}, {pipeline_mode = #tpu.pipeline_mode<synchronous>, transform_indices = @transform_8, window_bounds = array<i64: 1, 32>}, {transform_indices = @transform_9, window_bounds = array<i64: 128, 32>}]} {
    %c0 = arith.constant 0 : index
    %c0_0 = arith.constant 0 : index
    %0 = vector.load %arg3[%c0, %c0_0] : memref<1x128xf32, #tpu.memory_space<vmem>>, vector<1x128xf32>
    %c0_1 = arith.constant 0 : index
    %c0_2 = arith.constant 0 : index
    %1 = vector.load %arg5[%c0_1, %c0_2] : memref<1x1024xf32, #tpu.memory_space<vmem>>, vector<1x1024xf32>
    %c0_3 = arith.constant 0 : index
    %c0_4 = arith.constant 0 : index
    %2 = vector.load %arg7[%c0_3, %c0_4] : memref<1x128xf32, #tpu.memory_space<vmem>>, vector<1x128xf32>
    %c0_5 = arith.constant 0 : index
    %c0_6 = arith.constant 0 : index
    %3 = vector.load %arg9[%c0_5, %c0_6] : memref<1x32xf32, #tpu.memory_space<vmem>>, vector<1x32xf32>
    %c0_7 = arith.constant 0 : index
    %c0_8 = arith.constant 0 : index
    %4 = vector.load %arg1[%c0_7, %c0_8] : memref<128x8xbf16, #tpu.memory_space<vmem>>, vector<128x8xbf16>
    %c0_9 = arith.constant 0 : index
    %c0_10 = arith.constant 0 : index
    %5 = vector.load %arg2[%c0_9, %c0_10] : memref<8x128xbf16, #tpu.memory_space<vmem>>, vector<8x128xbf16>
    %cst = arith.constant dense<0.000000e+00> : vector<128x128xf32>
    %6 = tpu.matmul %4, %5, %cst {dimension_numbers = #tpu.dot_dimension_numbers<[1], [0], [0], [1], [0, 0, 1, 1], [], []>} : vector<128x8xbf16>, vector<8x128xbf16>, vector<128x128xf32> -> vector<128x128xf32>
    %7 = vector.broadcast %0 : vector<1x128xf32> to vector<128x128xf32>
    %8 = arith.addf %6, %7 : vector<128x128xf32>
    %cst_11 = arith.constant 0.000000e+00 : f32
    %9 = vector.broadcast %cst_11 : f32 to vector<128x128xf32>
    %10 = arith.maximumf %8, %9 : vector<128x128xf32>
    %11 = arith.truncf %10 : vector<128x128xf32> to vector<128x128xbf16>
    %c0_12 = arith.constant 0 : index
    %c0_13 = arith.constant 0 : index
    %12 = vector.load %arg4[%c0_12, %c0_13] : memref<128x1024xbf16, #tpu.memory_space<vmem>>, vector<128x1024xbf16>
    %cst_14 = arith.constant dense<0.000000e+00> : vector<128x1024xf32>
    %13 = tpu.matmul %11, %12, %cst_14 {dimension_numbers = #tpu.dot_dimension_numbers<[1], [0], [0], [1], [0, 0, 1, 1], [], []>} : vector<128x128xbf16>, vector<128x1024xbf16>, vector<128x1024xf32> -> vector<128x1024xf32>
    %14 = vector.broadcast %1 : vector<1x1024xf32> to vector<128x1024xf32>
    %15 = arith.addf %13, %14 : vector<128x1024xf32>
    %cst_15 = arith.constant 0.000000e+00 : f32
    %16 = vector.broadcast %cst_15 : f32 to vector<128x1024xf32>
    %17 = arith.maximumf %15, %16 : vector<128x1024xf32>
    %18 = arith.truncf %17 : vector<128x1024xf32> to vector<128x1024xbf16>
    %c0_16 = arith.constant 0 : index
    %c0_17 = arith.constant 0 : index
    %19 = vector.load %arg6[%c0_16, %c0_17] : memref<1024x128xbf16, #tpu.memory_space<vmem>>, vector<1024x128xbf16>
    %cst_18 = arith.constant dense<0.000000e+00> : vector<128x128xf32>
    %20 = tpu.matmul %18, %19, %cst_18 {dimension_numbers = #tpu.dot_dimension_numbers<[1], [0], [0], [1], [0, 0, 1, 1], [], []>} : vector<128x1024xbf16>, vector<1024x128xbf16>, vector<128x128xf32> -> vector<128x128xf32>
    %21 = vector.broadcast %2 : vector<1x128xf32> to vector<128x128xf32>
    %22 = arith.addf %20, %21 : vector<128x128xf32>
    %cst_19 = arith.constant 0.000000e+00 : f32
    %23 = vector.broadcast %cst_19 : f32 to vector<128x128xf32>
    %24 = arith.maximumf %22, %23 : vector<128x128xf32>
    %25 = arith.truncf %24 : vector<128x128xf32> to vector<128x128xbf16>
    %c0_20 = arith.constant 0 : index
    %c0_21 = arith.constant 0 : index
    %26 = vector.load %arg8[%c0_20, %c0_21] : memref<128x32xbf16, #tpu.memory_space<vmem>>, vector<128x32xbf16>
    %cst_22 = arith.constant dense<0.000000e+00> : vector<128x32xf32>
    %27 = tpu.matmul %25, %26, %cst_22 {dimension_numbers = #tpu.dot_dimension_numbers<[1], [0], [0], [1], [0, 0, 1, 1], [], []>} : vector<128x128xbf16>, vector<128x32xbf16>, vector<128x32xf32> -> vector<128x32xf32>
    %28 = vector.broadcast %3 : vector<1x32xf32> to vector<128x32xf32>
    %29 = arith.addf %27, %28 : vector<128x32xf32>
    %c0_23 = arith.constant 0 : index
    %c0_24 = arith.constant 0 : index
    %30 = vector.load %arg10[%c0_23, %c0_24] : memref<128x32xf32, #tpu.memory_space<vmem>>, vector<128x32xf32>
    tpu.vector_store %arg10[%c0_23, %c0_24], %29 {strides = array<i32>} : memref<128x32xf32, #tpu.memory_space<vmem>>, vector<128x32xf32>,
    return
  }
  func.func @transform_0(%arg0: i32) -> (i32, i32) {
    %c0_i32 = arith.constant 0 : i32
    %c0_i32_0 = arith.constant 0 : i32
    return %arg0, %c0_i32 : i32, i32
  }
  func.func @transform_1(%arg0: i32) -> (i32, i32) {
    %c0_i32 = arith.constant 0 : i32
    %c0_i32_0 = arith.constant 0 : i32
    %c0_i32_1 = arith.constant 0 : i32
    return %c0_i32, %c0_i32_0 : i32, i32
  }
  func.func @transform_2(%arg0: i32) -> (i32, i32) {
    %c0_i32 = arith.constant 0 : i32
    %c0_i32_0 = arith.constant 0 : i32
    %c0_i32_1 = arith.constant 0 : i32
    return %c0_i32, %c0_i32_0 : i32, i32
  }
  func.func @transform_3(%arg0: i32) -> (i32, i32) {
    %c0_i32 = arith.constant 0 : i32
    %c0_i32_0 = arith.constant 0 : i32
    %c0_i32_1 = arith.constant 0 : i32
    return %c0_i32, %c0_i32_0 : i32, i32
  }
  func.func @transform_4(%arg0: i32) -> (i32, i32) {
    %c0_i32 = arith.constant 0 : i32
    %c0_i32_0 = arith.constant 0 : i32
    %c0_i32_1 = arith.constant 0 : i32
    return %c0_i32, %c0_i32_0 : i32, i32
  }
  func.func @transform_5(%arg0: i32) -> (i32, i32) {
    %c0_i32 = arith.constant 0 : i32
    %c0_i32_0 = arith.constant 0 : i32
    %c0_i32_1 = arith.constant 0 : i32
    return %c0_i32, %c0_i32_0 : i32, i32
  }
  func.func @transform_6(%arg0: i32) -> (i32, i32) {
    %c0_i32 = arith.constant 0 : i32
    %c0_i32_0 = arith.constant 0 : i32
    %c0_i32_1 = arith.constant 0 : i32
    return %c0_i32, %c0_i32_0 : i32, i32
  }
  func.func @transform_7(%arg0: i32) -> (i32, i32) {
    %c0_i32 = arith.constant 0 : i32
    %c0_i32_0 = arith.constant 0 : i32
    %c0_i32_1 = arith.constant 0 : i32
    return %c0_i32, %c0_i32_0 : i32, i32
  }
  func.func @transform_8(%arg0: i32) -> (i32, i32) {
    %c0_i32 = arith.constant 0 : i32
    %c0_i32_0 = arith.constant 0 : i32
    %c0_i32_1 = arith.constant 0 : i32
    return %c0_i32, %c0_i32_0 : i32, i32
  }
  func.func @transform_9(%arg0: i32) -> (i32, i32) {
    %c0_i32 = arith.constant 0 : i32
    %c0_i32_0 = arith.constant 0 : i32
    return %arg0, %c0_i32 : i32, i32
  }
}

</mosaic_0001>

<llo_original>
// kernel: simple_broker_drl_forward.1
$region0: #{simple_broker_drl_forward.1}
  #allocation0 [shape = 'u32[]', space=smem, size = 0x4, offset = 0x4, fixed_abs, tag = 'smem constant byte address 0x4 - core index']
  #allocation1 [shape = 'u32[72,128]{1,0:T(1,128)}', space=vmem, size = 0x9000, scoped, tag = 'internal scratch']
  %s0 = inlined_call_operand.vmem [shape: bf16[128,8], index: 0, kind: input, shape index: {}]
  %s1 = inlined_call_operand.vmem [shape: bf16[8,128], index: 1, kind: input, shape index: {}]
  %s2 = inlined_call_operand.vmem [shape: f32[1,128], index: 2, kind: input, shape index: {}]
  %s3 = inlined_call_operand.hbm [shape: bf16[128,1024], index: 3, kind: input, shape index: {}]
  %s4 = inlined_call_operand.vmem [shape: f32[1,1024], index: 4, kind: input, shape index: {}]
  %s5 = inlined_call_operand.hbm [shape: bf16[1024,128], index: 5, kind: input, shape index: {}]
  %s6 = inlined_call_operand.vmem [shape: f32[1,128], index: 6, kind: input, shape index: {}]
  %s7 = inlined_call_operand.vmem [shape: bf16[128,32], index: 7, kind: input, shape index: {}]
  %s8 = inlined_call_operand.vmem [shape: f32[1,32], index: 8, kind: input, shape index: {}]
  %s9 = inlined_call_operand.vmem [shape: f32[128,32], index: 9, kind: output, shape index: {}]
  %s10 = sld [smem:[#allocation0]]
  $region54: #{simple_broker_drl_forward.1} parent=0
    _
  %s12 = ssub.s32 1, %s10
  %s13 = scalar_select 0, %s12, %s10
  $region1: #{simple_broker_drl_forward.1} parent=0
    #allocation2 [shape = 'u8[262144]{0}', space=vmem, size = 0x40000, scoped, tag = 'input window, operand 3, single buffered']
    #allocation3 [shape = 's32[1]{0}', space=sflag, size = 0x4, scoped, tag = 'scoped memory for simple_broker_drl_forward.1']
    #allocation4 [shape = 'u8[262144]{0}', space=vmem, size = 0x40000, scoped, tag = 'input window, operand 5, single buffered']
    #allocation5 [shape = 's32[1]{0}', space=sflag, size = 0x4, scoped, tag = 'scoped memory for simple_broker_drl_forward.1']
    %14 = vsyncpa [#allocation3], 0
    %15 = vsyncpa [#allocation5], 0
    // Predicated region
    $region2: #{simple_broker_drl_forward.1} parent=1 // pred_check
      _
    $region3: #{simple_broker_drl_forward.1} parent=1 // pred_check_branch
      %17 = sbr.rel (0) target = $region5
    $region4: #{simple_broker_drl_forward.1} parent=1 // pred_region
      _
    $region5: #{simple_broker_drl_forward.1} parent=1 // pred_fallthru
      _
    // Predicated region
    $region6: #{simple_broker_drl_forward.1} parent=1 // pred_check
      _
    $region7: #{simple_broker_drl_forward.1} parent=1 // pred_check_branch
      %19 = sbr.rel (0) target = $region9
    $region8: #{simple_broker_drl_forward.1} parent=1 // pred_region
      _
    $region9: #{simple_broker_drl_forward.1} parent=1 // pred_fallthru
      _
    // Predicated region
    $region10: #{simple_broker_drl_forward.1} parent=1 // pred_check
      _
    $region11: #{simple_broker_drl_forward.1} parent=1 // pred_check_branch
      %21 = sbr.rel (0) target = $region13
    $region12: #{simple_broker_drl_forward.1} parent=1 // pred_region
      _
    $region13: #{simple_broker_drl_forward.1} parent=1 // pred_fallthru
      _
    // Predicated region
    $region14: #{simple_broker_drl_forward.1} parent=1 // pred_check
      _
    $region15: #{simple_broker_drl_forward.1} parent=1 // pred_check_branch
      %23 = sbr.rel (0) target = $region17
    $region16: #{simple_broker_drl_forward.1} parent=1 // pred_region
      %25 = vsyncadd [#allocation3], 0
      %s26 = sshll.u32 %s3, 4
      %s27 = int_to_ptr.hbm [resolvable:$true] %s26
      %s28 = sshll.u32 [#allocation2], 4
      %s29 = int_to_ptr.vmem [resolvable:$true] %s28
      %34 = dma.hbm_to_vmem [thread:$0]  %s27, 8192, %s29, [#allocation3], 512, 512, 32
    $region17: #{simple_broker_drl_forward.1} parent=1 // pred_fallthru
      _
    // Predicated region
    $region18: #{simple_broker_drl_forward.1} parent=1 // pred_check
      _
    $region19: #{simple_broker_drl_forward.1} parent=1 // pred_check_branch
      %36 = sbr.rel (0) target = $region21
    $region20: #{simple_broker_drl_forward.1} parent=1 // pred_region
      _
    $region21: #{simple_broker_drl_forward.1} parent=1 // pred_fallthru
      _
    // Predicated region
    $region22: #{simple_broker_drl_forward.1} parent=1 // pred_check
      _
    $region23: #{simple_broker_drl_forward.1} parent=1 // pred_check_branch
      %38 = sbr.rel (0) target = $region25
    $region24: #{simple_broker_drl_forward.1} parent=1 // pred_region
      %40 = vsyncadd [#allocation5], 0
      %s41 = sshll.u32 %s5, 4
      %s42 = int_to_ptr.hbm [resolvable:$true] %s41
      %s43 = sshll.u32 [#allocation4], 4
      %s44 = int_to_ptr.vmem [resolvable:$true] %s43
      %49 = dma.hbm_to_vmem [thread:$0]  %s42, 8192, %s44, [#allocation5], 64, 64, 4
    $region25: #{simple_broker_drl_forward.1} parent=1 // pred_fallthru
      _
    // Predicated region
    $region26: #{simple_broker_drl_forward.1} parent=1 // pred_check
      _
    $region27: #{simple_broker_drl_forward.1} parent=1 // pred_check_branch
      %51 = sbr.rel (0) target = $region29
    $region28: #{simple_broker_drl_forward.1} parent=1 // pred_region
      _
    $region29: #{simple_broker_drl_forward.1} parent=1 // pred_fallthru
      _
    // Predicated region
    $region30: #{simple_broker_drl_forward.1} parent=1 // pred_check
      _
    $region31: #{simple_broker_drl_forward.1} parent=1 // pred_check_branch
      %53 = sbr.rel (0) target = $region33
    $region32: #{simple_broker_drl_forward.1} parent=1 // pred_region
      _
    $region33: #{simple_broker_drl_forward.1} parent=1 // pred_fallthru
      _
    // Predicated region
    $region34: #{simple_broker_drl_forward.1} parent=1 // pred_check
      _
    $region35: #{simple_broker_drl_forward.1} parent=1 // pred_check_branch
      %55 = sbr.rel (0) target = $region37
    $region36: #{simple_broker_drl_forward.1} parent=1 // pred_region
      _
    $region37: #{simple_broker_drl_forward.1} parent=1 // pred_fallthru
      _
    // Predicated region
    $region38: #{simple_broker_drl_forward.1} parent=1 // pred_check
      _
    $region39: #{simple_broker_drl_forward.1} parent=1 // pred_check_branch
      %57 = sbr.rel (0) target = $region41
    $region40: #{simple_broker_drl_forward.1} parent=1 // pred_region
      %59 = dma.done [#allocation3], 8192
    $region41: #{simple_broker_drl_forward.1} parent=1 // pred_fallthru
      _
    // Predicated region
    $region42: #{simple_broker_drl_forward.1} parent=1 // pred_check
      _
    $region43: #{simple_broker_drl_forward.1} parent=1 // pred_check_branch
      %61 = sbr.rel (0) target = $region45
    $region44: #{simple_broker_drl_forward.1} parent=1 // pred_region
      %63 = dma.done [#allocation5], 8192
    $region45: #{simple_broker_drl_forward.1} parent=1 // pred_fallthru
      _
    %v65 = vld [vmem:[%s2] sm:$0x1]
    %v66 = vld [vmem:[%s4] sm:$0xff]
    %v67 = vld [vmem:[%s6] sm:$0x1]
    %v68 = vld [vmem:[%s8] sm:$0x1]
    %v69 = vld [vmem:[%s0] sm:$0xf]
    %v70 = vld [vmem:[%s0 + $0x4] sm:$0xf]
    %v71 = vld [vmem:[%s0 + $0x8] sm:$0xf]
    %v72 = vld [vmem:[%s0 + $0xc] sm:$0xf]
    %v73 = vld [vmem:[%s0 + $0x10] sm:$0xf]
    %v74 = vld [vmem:[%s0 + $0x14] sm:$0xf]
    %v75 = vld [vmem:[%s0 + $0x18] sm:$0xf]
    %v76 = vld [vmem:[%s0 + $0x1c] sm:$0xf]
    %v77 = vld [vmem:[%s0 + $0x20] sm:$0xf]
    %v78 = vld [vmem:[%s0 + $0x24] sm:$0xf]
    %v79 = vld [vmem:[%s0 + $0x28] sm:$0xf]
    %v80 = vld [vmem:[%s0 + $0x2c] sm:$0xf]
    %v81 = vld [vmem:[%s0 + $0x30] sm:$0xf]
    %v82 = vld [vmem:[%s0 + $0x34] sm:$0xf]
    %v83 = vld [vmem:[%s0 + $0x38] sm:$0xf]
    %v84 = vld [vmem:[%s0 + $0x3c] sm:$0xf]
    %v85 = vld [vmem:[%s1] sm:$0xf]
    %v87 = vperm.slane %v65, 0
    %v105 = vunpack.c.l.b16 %v69
    %v106 = vunpack.c.l.b16 %v70
    %v107 = vunpack.c.l.b16 %v71
    %v108 = vunpack.c.l.b16 %v72
    %v109 = vunpack.c.l.b16 %v73
    %v110 = vunpack.c.l.b16 %v74
    %v111 = vunpack.c.l.b16 %v75
    %v112 = vunpack.c.l.b16 %v76
    %v113 = vunpack.c.l.b16 %v77
    %v114 = vunpack.c.l.b16 %v78
    %v115 = vunpack.c.l.b16 %v79
    %v116 = vunpack.c.l.b16 %v80
    %v117 = vunpack.c.l.b16 %v81
    %v118 = vunpack.c.l.b16 %v82
    %v119 = vunpack.c.l.b16 %v83
    %v120 = vunpack.c.l.b16 %v84
    %v121 = vpack.c.b16 %v106, %v105
    %v122 = vpack.c.b16 %v108, %v107
    %v123 = vpack.c.b16 %v110, %v109
    %v124 = vpack.c.b16 %v112, %v111
    %v125 = vpack.c.b16 %v114, %v113
    %v126 = vpack.c.b16 %v116, %v115
    %v127 = vpack.c.b16 %v118, %v117
    %v128 = vpack.c.b16 %v120, %v119
    %vm129 = vcmask 64512
    %v131 = vsel %vm129, %v121, 0
    %v134 = vsel %vm129, %v122, 0
    %v137 = vsel %vm129, %v123, 0
    %v140 = vsel %vm129, %v124, 0
    %v143 = vsel %vm129, %v125, 0
    %v146 = vsel %vm129, %v126, 0
    %v149 = vsel %vm129, %v127, 0
    %v152 = vsel %vm129, %v128, 0
    %vm154 = vcmask 1043456
    %v156 = vsel %vm154, %v85, 0
    %158 = vmatpush.bf16.msra.mxu0 0
    %159 = vmatpush.bf16.msra.mxu0 0
    %160 = vmatpush.bf16.msra.mxu0 0
    %161 = vmatpush.bf16.msra.mxu0 0
    %162 = vmatpush.bf16.msra.mxu0 0
    %163 = vmatpush.bf16.msra.mxu0 0
    %164 = vmatpush.bf16.msra.mxu0 0
    %165 = vmatpush.bf16.msra.mxu0 %v156
    %166 = vmatmul.bf16.gmra.mxu0 %v131
    %v167 = vpop.f32.mrf.mxu0
    %v168 = vadd.f32 %v87, %v167
    %v169 = vpop.f32.mrf.mxu0
    %v170 = vadd.f32 %v87, %v169
    %171 = vmatmul.bf16.gmra.mxu0 %v134
    %v172 = vpop.f32.mrf.mxu0
    %v173 = vadd.f32 %v87, %v172
    %v174 = vpop.f32.mrf.mxu0
    %v175 = vadd.f32 %v87, %v174
    %176 = vmatmul.bf16.gmra.mxu0 %v137
    %v177 = vpop.f32.mrf.mxu0
    %v178 = vadd.f32 %v87, %v177
    %v179 = vpop.f32.mrf.mxu0
    %v180 = vadd.f32 %v87, %v179
    %181 = vmatmul.bf16.gmra.mxu0 %v140
    %v182 = vpop.f32.mrf.mxu0
    %v183 = vadd.f32 %v87, %v182
    %v184 = vpop.f32.mrf.mxu0
    %v185 = vadd.f32 %v87, %v184
    %186 = vmatmul.bf16.gmra.mxu0 %v143
    %v187 = vpop.f32.mrf.mxu0
    %v188 = vadd.f32 %v87, %v187
    %v189 = vpop.f32.mrf.mxu0
    %v190 = vadd.f32 %v87, %v189
    %191 = vmatmul.bf16.gmra.mxu0 %v146
    %v192 = vpop.f32.mrf.mxu0
    %v193 = vadd.f32 %v87, %v192
    %v194 = vpop.f32.mrf.mxu0
    %v195 = vadd.f32 %v87, %v194
    %196 = vmatmul.bf16.gmra.mxu0 %v149
    %v197 = vpop.f32.mrf.mxu0
    %v198 = vadd.f32 %v87, %v197
    %v199 = vpop.f32.mrf.mxu0
    %v200 = vadd.f32 %v87, %v199
    %201 = vmatmul.bf16.gmra.mxu0 %v152
    %v202 = vpop.f32.mrf.mxu0
    %v203 = vadd.f32 %v87, %v202
    %v204 = vpop.f32.mrf.mxu0
    %v205 = vadd.f32 %v87, %v204
    %206 = vdwg.mxu0
    %v207 = vmax.f32 %v168, 0.0
    %v208 = vmax.f32 %v170, 0.0
    %v209 = vmax.f32 %v173, 0.0
    %v210 = vmax.f32 %v175, 0.0
    %v211 = vmax.f32 %v178, 0.0
    %v212 = vmax.f32 %v180, 0.0
    %v213 = vmax.f32 %v183, 0.0
    %v214 = vmax.f32 %v185, 0.0
    %v215 = vmax.f32 %v188, 0.0
    %v216 = vmax.f32 %v190, 0.0
    %v217 = vmax.f32 %v193, 0.0
    %v218 = vmax.f32 %v195, 0.0
    %v219 = vmax.f32 %v198, 0.0
    %v220 = vmax.f32 %v200, 0.0
    %v221 = vmax.f32 %v203, 0.0
    %v222 = vmax.f32 %v205, 0.0
    %v223 = vpack.c.bf16 %v208, %v207
    %v224 = vpack.c.bf16 %v210, %v209
    %v225 = vpack.c.bf16 %v212, %v211
    %v226 = vpack.c.bf16 %v214, %v213
    %v227 = vpack.c.bf16 %v216, %v215
    %v228 = vpack.c.bf16 %v218, %v217
    %v229 = vpack.c.bf16 %v220, %v219
    %v230 = vpack.c.bf16 %v222, %v221
    %v231 = vld [vmem:[#allocation2] sm:$0xff]
    %v232 = vld [vmem:[#allocation2 + $0x8] sm:$0xff]
    %v233 = vld [vmem:[#allocation2 + $0x10] sm:$0xff]
    %v234 = vld [vmem:[#allocation2 + $0x18] sm:$0xff]
    %v235 = vld [vmem:[#allocation2 + $0x20] sm:$0xff]
    %v236 = vld [vmem:[#allocation2 + $0x28] sm:$0xff]
    %v237 = vld [vmem:[#allocation2 + $0x30] sm:$0xff]
    %v238 = vld [vmem:[#allocation2 + $0x38] sm:$0xff]
    %v239 = vld [vmem:[#allocation2 + $0x40] sm:$0xff]
    %v240 = vld [vmem:[#allocation2 + $0x48] sm:$0xff]
    %v241 = vld [vmem:[#allocation2 + $0x50] sm:$0xff]
    %v242 = vld [vmem:[#allocation2 + $0x58] sm:$0xff]
    %v243 = vld [vmem:[#allocation2 + $0x60] sm:$0xff]
    %v244 = vld [vmem:[#allocation2 + $0x68] sm:$0xff]
    %v245 = vld [vmem:[#allocation2 + $0x70] sm:$0xff]
    %v246 = vld [vmem:[#allocation2 + $0x78] sm:$0xff]
    %v247 = vld [vmem:[#allocation2 + $0x80] sm:$0xff]
    %v248 = vld [vmem:[#allocation2 + $0x88] sm:$0xff]
    %v249 = vld [vmem:[#allocation2 + $0x90] sm:$0xff]
    %v250 = vld [vmem:[#allocation2 + $0x98] sm:$0xff]
    %v251 = vld [vmem:[#allocation2 + $0xa0] sm:$0xff]
    %v252 = vld [vmem:[#allocation2 + $0xa8] sm:$0xff]
    %v253 = vld [vmem:[#allocation2 + $0xb0] sm:$0xff]
    %v254 = vld [vmem:[#allocation2 + $0xb8] sm:$0xff]
    %v255 = vld [vmem:[#allocation2 + $0xc0] sm:$0xff]
    %v256 = vld [vmem:[#allocation2 + $0xc8] sm:$0xff]
    %v257 = vld [vmem:[#allocation2 + $0xd0] sm:$0xff]
    %v258 = vld [vmem:[#allocation2 + $0xd8] sm:$0xff]
    %v259 = vld [vmem:[#allocation2 + $0xe0] sm:$0xff]
    %v260 = vld [vmem:[#allocation2 + $0xe8] sm:$0xff]
    %v261 = vld [vmem:[#allocation2 + $0xf0] sm:$0xff]
    %v262 = vld [vmem:[#allocation2 + $0xf8] sm:$0xff]
    %v263 = vld [vmem:[#allocation2 + $0x100] sm:$0xff]
    %v264 = vld [vmem:[#allocation2 + $0x108] sm:$0xff]
    %v265 = vld [vmem:[#allocation2 + $0x110] sm:$0xff]
    %v266 = vld [vmem:[#allocation2 + $0x118] sm:$0xff]
    %v267 = vld [vmem:[#allocation2 + $0x120] sm:$0xff]
    %v268 = vld [vmem:[#allocation2 + $0x128] sm:$0xff]
    %v269 = vld [vmem:[#allocation2 + $0x130] sm:$0xff]
    %v270 = vld [vmem:[#allocation2 + $0x138] sm:$0xff]
    %v271 = vld [vmem:[#allocation2 + $0x140] sm:$0xff]
    %v272 = vld [vmem:[#allocation2 + $0x148] sm:$0xff]
    %v273 = vld [vmem:[#allocation2 + $0x150] sm:$0xff]
    %v274 = vld [vmem:[#allocation2 + $0x158] sm:$0xff]
    %v275 = vld [vmem:[#allocation2 + $0x160] sm:$0xff]
    %v276 = vld [vmem:[#allocation2 + $0x168] sm:$0xff]
    %v277 = vld [vmem:[#allocation2 + $0x170] sm:$0xff]
    %v278 = vld [vmem:[#allocation2 + $0x178] sm:$0xff]
    %v279 = vld [vmem:[#allocation2 + $0x180] sm:$0xff]
    %v280 = vld [vmem:[#allocation2 + $0x188] sm:$0xff]
    %v281 = vld [vmem:[#allocation2 + $0x190] sm:$0xff]
    %v282 = vld [vmem:[#allocation2 + $0x198] sm:$0xff]
    %v283 = vld [vmem:[#allocation2 + $0x1a0] sm:$0xff]
    %v284 = vld [vmem:[#allocation2 + $0x1a8] sm:$0xff]
    %v285 = vld [vmem:[#allocation2 + $0x1b0] sm:$0xff]
    %v286 = vld [vmem:[#allocation2 + $0x1b8] sm:$0xff]
    %v287 = vld [vmem:[#allocation2 + $0x1c0] sm:$0xff]
    %v288 = vld [vmem:[#allocation2 + $0x1c8] sm:$0xff]
    %v289 = vld [vmem:[#allocation2 + $0x1d0] sm:$0xff]
    %v290 = vld [vmem:[#allocation2 + $0x1d8] sm:$0xff]
    %v291 = vld [vmem:[#allocation2 + $0x1e0] sm:$0xff]
    %v292 = vld [vmem:[#allocation2 + $0x1e8] sm:$0xff]
    %v293 = vld [vmem:[#allocation2 + $0x1f0] sm:$0xff]
    %v294 = vld [vmem:[#allocation2 + $0x1f8] sm:$0xff]
    %v296 = vperm.slane %v66, 0
    %v297 = vperm.slane %v66, 1
    %v298 = vperm.slane %v66, 2
    %v299 = vperm.slane %v66, 3
    %v300 = vperm.slane %v66, 4
    %v301 = vperm.slane %v66, 5
    %v302 = vperm.slane %v66, 6
    %v303 = vperm.slane %v66, 7
    %v376 = vunpack.c.l.b16 %v231
    %v377 = vunpack.c.h.b16 %v231
    %v378 = vunpack.c.l.b16 %v232
    %v379 = vunpack.c.h.b16 %v232
    %v380 = vunpack.c.l.b16 %v233
    %v381 = vunpack.c.h.b16 %v233
    %v382 = vunpack.c.l.b16 %v234
    %v383 = vunpack.c.h.b16 %v234
    %v384 = vunpack.c.l.b16 %v235
    %v385 = vunpack.c.h.b16 %v235
    %v386 = vunpack.c.l.b16 %v236
    %v387 = vunpack.c.h.b16 %v236
    %v388 = vunpack.c.l.b16 %v237
    %v389 = vunpack.c.h.b16 %v237
    %v390 = vunpack.c.l.b16 %v238
    %v391 = vunpack.c.h.b16 %v238
    %v392 = vunpack.c.l.b16 %v239
    %v393 = vunpack.c.h.b16 %v239
    %v394 = vunpack.c.l.b16 %v240
    %v395 = vunpack.c.h.b16 %v240
    %v396 = vunpack.c.l.b16 %v241
    %v397 = vunpack.c.h.b16 %v241
    %v398 = vunpack.c.l.b16 %v242
    %v399 = vunpack.c.h.b16 %v242
    %v400 = vunpack.c.l.b16 %v243
    %v401 = vunpack.c.h.b16 %v243
    %v402 = vunpack.c.l.b16 %v244
    %v403 = vunpack.c.h.b16 %v244
    %v404 = vunpack.c.l.b16 %v245
    %v405 = vunpack.c.h.b16 %v245
    %v406 = vunpack.c.l.b16 %v246
    %v407 = vunpack.c.h.b16 %v246
    %v408 = vunpack.c.l.b16 %v247
    %v409 = vunpack.c.h.b16 %v247
    %v410 = vunpack.c.l.b16 %v248
    %v411 = vunpack.c.h.b16 %v248
    %v412 = vunpack.c.l.b16 %v249
    %v413 = vunpack.c.h.b16 %v249
    %v414 = vunpack.c.l.b16 %v250
    %v415 = vunpack.c.h.b16 %v250
    %v416 = vunpack.c.l.b16 %v251
    %v417 = vunpack.c.h.b16 %v251
    %v418 = vunpack.c.l.b16 %v252
    %v419 = vunpack.c.h.b16 %v252
    %v420 = vunpack.c.l.b16 %v253
    %v421 = vunpack.c.h.b16 %v253
    %v422 = vunpack.c.l.b16 %v254
    %v423 = vunpack.c.h.b16 %v254
    %v424 = vunpack.c.l.b16 %v255
    %v425 = vunpack.c.h.b16 %v255
    %v426 = vunpack.c.l.b16 %v256
    %v427 = vunpack.c.h.b16 %v256
    %v428 = vunpack.c.l.b16 %v257
    %v429 = vunpack.c.h.b16 %v257
    %v430 = vunpack.c.l.b16 %v258
    %v431 = vunpack.c.h.b16 %v258
    %v432 = vunpack.c.l.b16 %v259
    %v433 = vunpack.c.h.b16 %v259
    %v434 = vunpack.c.l.b16 %v260
    %v435 = vunpack.c.h.b16 %v260
    %v436 = vunpack.c.l.b16 %v261
    %v437 = vunpack.c.h.b16 %v261
    %v438 = vunpack.c.l.b16 %v262
    %v439 = vunpack.c.h.b16 %v262
    %v440 = vunpack.c.l.b16 %v263
    %v441 = vunpack.c.h.b16 %v263
    %v442 = vunpack.c.l.b16 %v264
    %v443 = vunpack.c.h.b16 %v264
    %v444 = vunpack.c.l.b16 %v265
    %v445 = vunpack.c.h.b16 %v265
    %v446 = vunpack.c.l.b16 %v266
    %v447 = vunpack.c.h.b16 %v266
    %v448 = vunpack.c.l.b16 %v267
    %v449 = vunpack.c.h.b16 %v267
    %v450 = vunpack.c.l.b16 %v268
    %v451 = vunpack.c.h.b16 %v268
    %v452 = vunpack.c.l.b16 %v269
    %v453 = vunpack.c.h.b16 %v269
    %v454 = vunpack.c.l.b16 %v270
    %v455 = vunpack.c.h.b16 %v270
    %v456 = vunpack.c.l.b16 %v271
    %v457 = vunpack.c.h.b16 %v271
    %v458 = vunpack.c.l.b16 %v272
    %v459 = vunpack.c.h.b16 %v272
    %v460 = vunpack.c.l.b16 %v273
    %v461 = vunpack.c.h.b16 %v273
    %v462 = vunpack.c.l.b16 %v274
    %v463 = vunpack.c.h.b16 %v274
    %v464 = vunpack.c.l.b16 %v275
    %v465 = vunpack.c.h.b16 %v275
    %v466 = vunpack.c.l.b16 %v276
    %v467 = vunpack.c.h.b16 %v276
    %v468 = vunpack.c.l.b16 %v277
    %v469 = vunpack.c.h.b16 %v277
    %v470 = vunpack.c.l.b16 %v278
    %v471 = vunpack.c.h.b16 %v278
    %v472 = vunpack.c.l.b16 %v279
    %v473 = vunpack.c.h.b16 %v279
    %v474 = vunpack.c.l.b16 %v280
    %v475 = vunpack.c.h.b16 %v280
    %v476 = vunpack.c.l.b16 %v281
    %v477 = vunpack.c.h.b16 %v281
    %v478 = vunpack.c.l.b16 %v282
    %v479 = vunpack.c.h.b16 %v282
    %v480 = vunpack.c.l.b16 %v283
    %v481 = vunpack.c.h.b16 %v283
    %v482 = vunpack.c.l.b16 %v284
    %v483 = vunpack.c.h.b16 %v284
    %v484 = vunpack.c.l.b16 %v285
    %v485 = vunpack.c.h.b16 %v285
    %v486 = vunpack.c.l.b16 %v286
    %v487 = vunpack.c.h.b16 %v286
    %v488 = vunpack.c.l.b16 %v287
    %v489 = vunpack.c.h.b16 %v287
    %v490 = vunpack.c.l.b16 %v288
    %v491 = vunpack.c.h.b16 %v288
    %v492 = vunpack.c.l.b16 %v289
    %v493 = vunpack.c.h.b16 %v289
    %v494 = vunpack.c.l.b16 %v290
    %v495 = vunpack.c.h.b16 %v290
    %v496 = vunpack.c.l.b16 %v291
    %v497 = vunpack.c.h.b16 %v291
    %v498 = vunpack.c.l.b16 %v292
    %v499 = vunpack.c.h.b16 %v292
    %v500 = vunpack.c.l.b16 %v293
    %v501 = vunpack.c.h.b16 %v293
    %v502 = vunpack.c.l.b16 %v294
    %v503 = vunpack.c.h.b16 %v294
    %v504 = vpack.c.b16 %v384, %v376
    %v505 = vpack.c.b16 %v385, %v377
    %v506 = vpack.c.b16 %v386, %v378
    %v507 = vpack.c.b16 %v387, %v379
    %v508 = vpack.c.b16 %v388, %v380
    %v509 = vpack.c.b16 %v389, %v381
    %v510 = vpack.c.b16 %v390, %v382
    %v511 = vpack.c.b16 %v391, %v383
    %v512 = vpack.c.b16 %v400, %v392
    %v513 = vpack.c.b16 %v401, %v393
    %v514 = vpack.c.b16 %v402, %v394
    %v515 = vpack.c.b16 %v403, %v395
    %v516 = vpack.c.b16 %v404, %v396
    %v517 = vpack.c.b16 %v405, %v397
    %v518 = vpack.c.b16 %v406, %v398
    %v519 = vpack.c.b16 %v407, %v399
    %v520 = vpack.c.b16 %v416, %v408
    %v521 = vpack.c.b16 %v417, %v409
    %v522 = vpack.c.b16 %v418, %v410
    %v523 = vpack.c.b16 %v419, %v411
    %v524 = vpack.c.b16 %v420, %v412
    %v525 = vpack.c.b16 %v421, %v413
    %v526 = vpack.c.b16 %v422, %v414
    %v527 = vpack.c.b16 %v423, %v415
    %v528 = vpack.c.b16 %v432, %v424
    %v529 = vpack.c.b16 %v433, %v425
    %v530 = vpack.c.b16 %v434, %v426
    %v531 = vpack.c.b16 %v435, %v427
    %v532 = vpack.c.b16 %v436, %v428
    %v533 = vpack.c.b16 %v437, %v429
    %v534 = vpack.c.b16 %v438, %v430
    %v535 = vpack.c.b16 %v439, %v431
    %v536 = vpack.c.b16 %v448, %v440
    %v537 = vpack.c.b16 %v449, %v441
    %v538 = vpack.c.b16 %v450, %v442
    %v539 = vpack.c.b16 %v451, %v443
    %v540 = vpack.c.b16 %v452, %v444
    %v541 = vpack.c.b16 %v453, %v445
    %v542 = vpack.c.b16 %v454, %v446
    %v543 = vpack.c.b16 %v455, %v447
    %v544 = vpack.c.b16 %v464, %v456
    %v545 = vpack.c.b16 %v465, %v457
    %v546 = vpack.c.b16 %v466, %v458
    %v547 = vpack.c.b16 %v467, %v459
    %v548 = vpack.c.b16 %v468, %v460
    %v549 = vpack.c.b16 %v469, %v461
    %v550 = vpack.c.b16 %v470, %v462
    %v551 = vpack.c.b16 %v471, %v463
    %v552 = vpack.c.b16 %v480, %v472
    %v553 = vpack.c.b16 %v481, %v473
    %v554 = vpack.c.b16 %v482, %v474
    %v555 = vpack.c.b16 %v483, %v475
    %v556 = vpack.c.b16 %v484, %v476
    %v557 = vpack.c.b16 %v485, %v477
    %v558 = vpack.c.b16 %v486, %v478
    %v559 = vpack.c.b16 %v487, %v479
    %v560 = vpack.c.b16 %v496, %v488
    %v561 = vpack.c.b16 %v497, %v489
    %v562 = vpack.c.b16 %v498, %v490
    %v563 = vpack.c.b16 %v499, %v491
    %v564 = vpack.c.b16 %v500, %v492
    %v565 = vpack.c.b16 %v501, %v493
    %v566 = vpack.c.b16 %v502, %v494
    %v567 = vpack.c.b16 %v503, %v495
    %632 = vmatpush.bf16.msra.mxu0 %v560
    %633 = vmatpush.bf16.msra.mxu0 %v552
    %634 = vmatpush.bf16.msra.mxu0 %v544
    %635 = vmatpush.bf16.msra.mxu0 %v536
    %636 = vmatpush.bf16.msra.mxu0 %v528
    %637 = vmatpush.bf16.msra.mxu0 %v520
    %638 = vmatpush.bf16.msra.mxu0 %v512
    %639 = vmatpush.bf16.msra.mxu0 %v504
    %640 = vmatmul.bf16.gmra.mxu0 %v223
    %v641 = vpop.f32.mrf.mxu0
    %v642 = vadd.f32 %v296, %v641
    %v643 = vpop.f32.mrf.mxu0
    %v644 = vadd.f32 %v296, %v643
    %645 = vmatmul.bf16.gmra.mxu0 %v224
    %v646 = vpop.f32.mrf.mxu0
    %v647 = vadd.f32 %v296, %v646
    %v648 = vpop.f32.mrf.mxu0
    %v649 = vadd.f32 %v296, %v648
    %650 = vmatmul.bf16.gmra.mxu0 %v225
    %v651 = vpop.f32.mrf.mxu0
    %v652 = vadd.f32 %v296, %v651
    %v653 = vpop.f32.mrf.mxu0
    %v654 = vadd.f32 %v296, %v653
    %655 = vmatmul.bf16.gmra.mxu0 %v226
    %v656 = vpop.f32.mrf.mxu0
    %v657 = vadd.f32 %v296, %v656
    %v658 = vpop.f32.mrf.mxu0
    %v659 = vadd.f32 %v296, %v658
    %660 = vmatmul.bf16.gmra.mxu0 %v227
    %v661 = vpop.f32.mrf.mxu0
    %v662 = vadd.f32 %v296, %v661
    %v663 = vpop.f32.mrf.mxu0
    %v664 = vadd.f32 %v296, %v663
    %665 = vmatmul.bf16.gmra.mxu0 %v228
    %v666 = vpop.f32.mrf.mxu0
    %v667 = vadd.f32 %v296, %v666
    %v668 = vpop.f32.mrf.mxu0
    %v669 = vadd.f32 %v296, %v668
    %670 = vmatmul.bf16.gmra.mxu0 %v229
    %v671 = vpop.f32.mrf.mxu0
    %v672 = vadd.f32 %v296, %v671
    %v673 = vpop.f32.mrf.mxu0
    %v674 = vadd.f32 %v296, %v673
    %675 = vmatmul.bf16.gmra.mxu0 %v230
    %v676 = vpop.f32.mrf.mxu0
    %v677 = vadd.f32 %v296, %v676
    %v678 = vpop.f32.mrf.mxu0
    %v679 = vadd.f32 %v296, %v678
    %680 = vdwg.mxu0
    %681 = vmatpush.bf16.msra.mxu0 %v561
    %682 = vmatpush.bf16.msra.mxu0 %v553
    %683 = vmatpush.bf16.msra.mxu0 %v545
    %684 = vmatpush.bf16.msra.mxu0 %v537
    %685 = vmatpush.bf16.msra.mxu0 %v529
    %686 = vmatpush.bf16.msra.mxu0 %v521
    %687 = vmatpush.bf16.msra.mxu0 %v513
    %688 = vmatpush.bf16.msra.mxu0 %v505
    %689 = vmatmul.bf16.gmra.mxu0 %v223
    %v690 = vpop.f32.mrf.mxu0
    %v691 = vadd.f32 %v297, %v690
    %v692 = vpop.f32.mrf.mxu0
    %v693 = vadd.f32 %v297, %v692
    %694 = vmatmul.bf16.gmra.mxu0 %v224
    %v695 = vpop.f32.mrf.mxu0
    %v696 = vadd.f32 %v297, %v695
    %v697 = vpop.f32.mrf.mxu0
    %v698 = vadd.f32 %v297, %v697
    %699 = vmatmul.bf16.gmra.mxu0 %v225
    %v700 = vpop.f32.mrf.mxu0
    %v701 = vadd.f32 %v297, %v700
    %v702 = vpop.f32.mrf.mxu0
    %v703 = vadd.f32 %v297, %v702
    %704 = vmatmul.bf16.gmra.mxu0 %v226
    %v705 = vpop.f32.mrf.mxu0
    %v706 = vadd.f32 %v297, %v705
    %v707 = vpop.f32.mrf.mxu0
    %v708 = vadd.f32 %v297, %v707
    %709 = vmatmul.bf16.gmra.mxu0 %v227
    %v710 = vpop.f32.mrf.mxu0
    %v711 = vadd.f32 %v297, %v710
    %v712 = vpop.f32.mrf.mxu0
    %v713 = vadd.f32 %v297, %v712
    %714 = vmatmul.bf16.gmra.mxu0 %v228
    %v715 = vpop.f32.mrf.mxu0
    %v716 = vadd.f32 %v297, %v715
    %v717 = vpop.f32.mrf.mxu0
    %v718 = vadd.f32 %v297, %v717
    %719 = vmatmul.bf16.gmra.mxu0 %v229
    %v720 = vpop.f32.mrf.mxu0
    %v721 = vadd.f32 %v297, %v720
    %v722 = vpop.f32.mrf.mxu0
    %v723 = vadd.f32 %v297, %v722
    %724 = vmatmul.bf16.gmra.mxu0 %v230
    %v725 = vpop.f32.mrf.mxu0
    %v726 = vadd.f32 %v297, %v725
    %v727 = vpop.f32.mrf.mxu0
    %v728 = vadd.f32 %v297, %v727
    %729 = vdwg.mxu0
    %730 = vmatpush.bf16.msra.mxu0 %v562
    %731 = vmatpush.bf16.msra.mxu0 %v554
    %732 = vmatpush.bf16.msra.mxu0 %v546
    %733 = vmatpush.bf16.msra.mxu0 %v538
    %734 = vmatpush.bf16.msra.mxu0 %v530
    %735 = vmatpush.bf16.msra.mxu0 %v522
    %736 = vmatpush.bf16.msra.mxu0 %v514
    %737 = vmatpush.bf16.msra.mxu0 %v506
    %738 = vmatmul.bf16.gmra.mxu0 %v223
    %v739 = vpop.f32.mrf.mxu0
    %v740 = vadd.f32 %v298, %v739
    %v741 = vpop.f32.mrf.mxu0
    %v742 = vadd.f32 %v298, %v741
    %743 = vmatmul.bf16.gmra.mxu0 %v224
    %v744 = vpop.f32.mrf.mxu0
    %v745 = vadd.f32 %v298, %v744
    %v746 = vpop.f32.mrf.mxu0
    %v747 = vadd.f32 %v298, %v746
    %748 = vmatmul.bf16.gmra.mxu0 %v225
    %v749 = vpop.f32.mrf.mxu0
    %v750 = vadd.f32 %v298, %v749
    %v751 = vpop.f32.mrf.mxu0
    %v752 = vadd.f32 %v298, %v751
    %753 = vmatmul.bf16.gmra.mxu0 %v226
    %v754 = vpop.f32.mrf.mxu0
    %v755 = vadd.f32 %v298, %v754
    %v756 = vpop.f32.mrf.mxu0
    %v757 = vadd.f32 %v298, %v756
    %758 = vmatmul.bf16.gmra.mxu0 %v227
    %v759 = vpop.f32.mrf.mxu0
    %v760 = vadd.f32 %v298, %v759
    %v761 = vpop.f32.mrf.mxu0
    %v762 = vadd.f32 %v298, %v761
    %763 = vmatmul.bf16.gmra.mxu0 %v228
    %v764 = vpop.f32.mrf.mxu0
    %v765 = vadd.f32 %v298, %v764
    %v766 = vpop.f32.mrf.mxu0
    %v767 = vadd.f32 %v298, %v766
    %768 = vmatmul.bf16.gmra.mxu0 %v229
    %v769 = vpop.f32.mrf.mxu0
    %v770 = vadd.f32 %v298, %v769
    %v771 = vpop.f32.mrf.mxu0
    %v772 = vadd.f32 %v298, %v771
    %773 = vmatmul.bf16.gmra.mxu0 %v230
    %v774 = vpop.f32.mrf.mxu0
    %v775 = vadd.f32 %v298, %v774
    %v776 = vpop.f32.mrf.mxu0
    %v777 = vadd.f32 %v298, %v776
    %778 = vdwg.mxu0
    %779 = vmatpush.bf16.msra.mxu0 %v563
    %780 = vmatpush.bf16.msra.mxu0 %v555
    %781 = vmatpush.bf16.msra.mxu0 %v547
    %782 = vmatpush.bf16.msra.mxu0 %v539
    %783 = vmatpush.bf16.msra.mxu0 %v531
    %784 = vmatpush.bf16.msra.mxu0 %v523
    %785 = vmatpush.bf16.msra.mxu0 %v515
    %786 = vmatpush.bf16.msra.mxu0 %v507
    %787 = vmatmul.bf16.gmra.mxu0 %v223
    %v788 = vpop.f32.mrf.mxu0
    %v789 = vadd.f32 %v299, %v788
    %v790 = vpop.f32.mrf.mxu0
    %v791 = vadd.f32 %v299, %v790
    %792 = vmatmul.bf16.gmra.mxu0 %v224
    %v793 = vpop.f32.mrf.mxu0
    %v794 = vadd.f32 %v299, %v793
    %v795 = vpop.f32.mrf.mxu0
    %v796 = vadd.f32 %v299, %v795
    %797 = vmatmul.bf16.gmra.mxu0 %v225
    %v798 = vpop.f32.mrf.mxu0
    %v799 = vadd.f32 %v299, %v798
    %v800 = vpop.f32.mrf.mxu0
    %v801 = vadd.f32 %v299, %v800
    %802 = vmatmul.bf16.gmra.mxu0 %v226
    %v803 = vpop.f32.mrf.mxu0
    %v804 = vadd.f32 %v299, %v803
    %v805 = vpop.f32.mrf.mxu0
    %v806 = vadd.f32 %v299, %v805
    %807 = vmatmul.bf16.gmra.mxu0 %v227
    %v808 = vpop.f32.mrf.mxu0
    %v809 = vadd.f32 %v299, %v808
    %v810 = vpop.f32.mrf.mxu0
    %v811 = vadd.f32 %v299, %v810
    %812 = vmatmul.bf16.gmra.mxu0 %v228
    %v813 = vpop.f32.mrf.mxu0
    %v814 = vadd.f32 %v299, %v813
    %v815 = vpop.f32.mrf.mxu0
    %v816 = vadd.f32 %v299, %v815
    %817 = vmatmul.bf16.gmra.mxu0 %v229
    %v818 = vpop.f32.mrf.mxu0
    %v819 = vadd.f32 %v299, %v818
    %v820 = vpop.f32.mrf.mxu0
    %v821 = vadd.f32 %v299, %v820
    %822 = vmatmul.bf16.gmra.mxu0 %v230
    %v823 = vpop.f32.mrf.mxu0
    %v824 = vadd.f32 %v299, %v823
    %v825 = vpop.f32.mrf.mxu0
    %v826 = vadd.f32 %v299, %v825
    %827 = vdwg.mxu0
    %828 = vmatpush.bf16.msra.mxu0 %v564
    %829 = vmatpush.bf16.msra.mxu0 %v556
    %830 = vmatpush.bf16.msra.mxu0 %v548
    %831 = vmatpush.bf16.msra.mxu0 %v540
    %832 = vmatpush.bf16.msra.mxu0 %v532
    %833 = vmatpush.bf16.msra.mxu0 %v524
    %834 = vmatpush.bf16.msra.mxu0 %v516
    %835 = vmatpush.bf16.msra.mxu0 %v508
    %836 = vmatmul.bf16.gmra.mxu0 %v223
    %v837 = vpop.f32.mrf.mxu0
    %v838 = vadd.f32 %v300, %v837
    %v839 = vpop.f32.mrf.mxu0
    %v840 = vadd.f32 %v300, %v839
    %841 = vmatmul.bf16.gmra.mxu0 %v224
    %v842 = vpop.f32.mrf.mxu0
    %v843 = vadd.f32 %v300, %v842
    %v844 = vpop.f32.mrf.mxu0
    %v845 = vadd.f32 %v300, %v844
    %846 = vmatmul.bf16.gmra.mxu0 %v225
    %v847 = vpop.f32.mrf.mxu0
    %v848 = vadd.f32 %v300, %v847
    %v849 = vpop.f32.mrf.mxu0
    %v850 = vadd.f32 %v300, %v849
    %851 = vmatmul.bf16.gmra.mxu0 %v226
    %v852 = vpop.f32.mrf.mxu0
    %v853 = vadd.f32 %v300, %v852
    %v854 = vpop.f32.mrf.mxu0
    %v855 = vadd.f32 %v300, %v854
    %856 = vmatmul.bf16.gmra.mxu0 %v227
    %v857 = vpop.f32.mrf.mxu0
    %v858 = vadd.f32 %v300, %v857
    %v859 = vpop.f32.mrf.mxu0
    %v860 = vadd.f32 %v300, %v859
    %861 = vmatmul.bf16.gmra.mxu0 %v228
    %v862 = vpop.f32.mrf.mxu0
    %v863 = vadd.f32 %v300, %v862
    %v864 = vpop.f32.mrf.mxu0
    %v865 = vadd.f32 %v300, %v864
    %866 = vmatmul.bf16.gmra.mxu0 %v229
    %v867 = vpop.f32.mrf.mxu0
    %v868 = vadd.f32 %v300, %v867
    %v869 = vpop.f32.mrf.mxu0
    %v870 = vadd.f32 %v300, %v869
    %871 = vmatmul.bf16.gmra.mxu0 %v230
    %v872 = vpop.f32.mrf.mxu0
    %v873 = vadd.f32 %v300, %v872
    %v874 = vpop.f32.mrf.mxu0
    %v875 = vadd.f32 %v300, %v874
    %876 = vdwg.mxu0
    %877 = vmatpush.bf16.msra.mxu0 %v565
    %878 = vmatpush.bf16.msra.mxu0 %v557
    %879 = vmatpush.bf16.msra.mxu0 %v549
    %880 = vmatpush.bf16.msra.mxu0 %v541
    %881 = vmatpush.bf16.msra.mxu0 %v533
    %882 = vmatpush.bf16.msra.mxu0 %v525
    %883 = vmatpush.bf16.msra.mxu0 %v517
    %884 = vmatpush.bf16.msra.mxu0 %v509
    %885 = vmatmul.bf16.gmra.mxu0 %v223
    %v886 = vpop.f32.mrf.mxu0
    %v887 = vadd.f32 %v301, %v886
    %v888 = vpop.f32.mrf.mxu0
    %v889 = vadd.f32 %v301, %v888
    %890 = vmatmul.bf16.gmra.mxu0 %v224
    %v891 = vpop.f32.mrf.mxu0
    %v892 = vadd.f32 %v301, %v891
    %v893 = vpop.f32.mrf.mxu0
    %v894 = vadd.f32 %v301, %v893
    %895 = vmatmul.bf16.gmra.mxu0 %v225
    %v896 = vpop.f32.mrf.mxu0
    %v897 = vadd.f32 %v301, %v896
    %v898 = vpop.f32.mrf.mxu0
    %v899 = vadd.f32 %v301, %v898
    %900 = vmatmul.bf16.gmra.mxu0 %v226
    %v901 = vpop.f32.mrf.mxu0
    %v902 = vadd.f32 %v301, %v901
    %v903 = vpop.f32.mrf.mxu0
    %v904 = vadd.f32 %v301, %v903
    %905 = vmatmul.bf16.gmra.mxu0 %v227
    %v906 = vpop.f32.mrf.mxu0
    %v907 = vadd.f32 %v301, %v906
    %v908 = vpop.f32.mrf.mxu0
    %v909 = vadd.f32 %v301, %v908
    %910 = vmatmul.bf16.gmra.mxu0 %v228
    %v911 = vpop.f32.mrf.mxu0
    %v912 = vadd.f32 %v301, %v911
    %v913 = vpop.f32.mrf.mxu0
    %v914 = vadd.f32 %v301, %v913
    %915 = vmatmul.bf16.gmra.mxu0 %v229
    %v916 = vpop.f32.mrf.mxu0
    %v917 = vadd.f32 %v301, %v916
    %v918 = vpop.f32.mrf.mxu0
    %v919 = vadd.f32 %v301, %v918
    %920 = vmatmul.bf16.gmra.mxu0 %v230
    %v921 = vpop.f32.mrf.mxu0
    %v922 = vadd.f32 %v301, %v921
    %v923 = vpop.f32.mrf.mxu0
    %v924 = vadd.f32 %v301, %v923
    %925 = vdwg.mxu0
    %926 = vmatpush.bf16.msra.mxu0 %v566
    %927 = vmatpush.bf16.msra.mxu0 %v558
    %928 = vmatpush.bf16.msra.mxu0 %v550
    %929 = vmatpush.bf16.msra.mxu0 %v542
    %930 = vmatpush.bf16.msra.mxu0 %v534
    %931 = vmatpush.bf16.msra.mxu0 %v526
    %932 = vmatpush.bf16.msra.mxu0 %v518
    %933 = vmatpush.bf16.msra.mxu0 %v510
    %934 = vmatmul.bf16.gmra.mxu0 %v223
    %v935 = vpop.f32.mrf.mxu0
    %v936 = vadd.f32 %v302, %v935
    %v937 = vpop.f32.mrf.mxu0
    %v938 = vadd.f32 %v302, %v937
    %939 = vmatmul.bf16.gmra.mxu0 %v224
    %v940 = vpop.f32.mrf.mxu0
    %v941 = vadd.f32 %v302, %v940
    %v942 = vpop.f32.mrf.mxu0
    %v943 = vadd.f32 %v302, %v942
    %944 = vmatmul.bf16.gmra.mxu0 %v225
    %v945 = vpop.f32.mrf.mxu0
    %v946 = vadd.f32 %v302, %v945
    %v947 = vpop.f32.mrf.mxu0
    %v948 = vadd.f32 %v302, %v947
    %949 = vmatmul.bf16.gmra.mxu0 %v226
    %v950 = vpop.f32.mrf.mxu0
    %v951 = vadd.f32 %v302, %v950
    %v952 = vpop.f32.mrf.mxu0
    %v953 = vadd.f32 %v302, %v952
    %954 = vmatmul.bf16.gmra.mxu0 %v227
    %v955 = vpop.f32.mrf.mxu0
    %v956 = vadd.f32 %v302, %v955
    %v957 = vpop.f32.mrf.mxu0
    %v958 = vadd.f32 %v302, %v957
    %959 = vmatmul.bf16.gmra.mxu0 %v228
    %v960 = vpop.f32.mrf.mxu0
    %v961 = vadd.f32 %v302, %v960
    %v962 = vpop.f32.mrf.mxu0
    %v963 = vadd.f32 %v302, %v962
    %964 = vmatmul.bf16.gmra.mxu0 %v229
    %v965 = vpop.f32.mrf.mxu0
    %v966 = vadd.f32 %v302, %v965
    %v967 = vpop.f32.mrf.mxu0
    %v968 = vadd.f32 %v302, %v967
    %969 = vmatmul.bf16.gmra.mxu0 %v230
    %v970 = vpop.f32.mrf.mxu0
    %v971 = vadd.f32 %v302, %v970
    %v972 = vpop.f32.mrf.mxu0
    %v973 = vadd.f32 %v302, %v972
    %974 = vdwg.mxu0
    %975 = vmatpush.bf16.msra.mxu0 %v567
    %976 = vmatpush.bf16.msra.mxu0 %v559
    %977 = vmatpush.bf16.msra.mxu0 %v551
    %978 = vmatpush.bf16.msra.mxu0 %v543
    %979 = vmatpush.bf16.msra.mxu0 %v535
    %980 = vmatpush.bf16.msra.mxu0 %v527
    %981 = vmatpush.bf16.msra.mxu0 %v519
    %982 = vmatpush.bf16.msra.mxu0 %v511
    %983 = vmatmul.bf16.gmra.mxu0 %v223
    %v984 = vpop.f32.mrf.mxu0
    %v985 = vadd.f32 %v303, %v984
    %v986 = vpop.f32.mrf.mxu0
    %v987 = vadd.f32 %v303, %v986
    %988 = vmatmul.bf16.gmra.mxu0 %v224
    %v989 = vpop.f32.mrf.mxu0
    %v990 = vadd.f32 %v303, %v989
    %v991 = vpop.f32.mrf.mxu0
    %v992 = vadd.f32 %v303, %v991
    %993 = vmatmul.bf16.gmra.mxu0 %v225
    %v994 = vpop.f32.mrf.mxu0
    %v995 = vadd.f32 %v303, %v994
    %v996 = vpop.f32.mrf.mxu0
    %v997 = vadd.f32 %v303, %v996
    %998 = vmatmul.bf16.gmra.mxu0 %v226
    %v999 = vpop.f32.mrf.mxu0
    %v1000 = vadd.f32 %v303, %v999
    %v1001 = vpop.f32.mrf.mxu0
    %v1002 = vadd.f32 %v303, %v1001
    %1003 = vmatmul.bf16.gmra.mxu0 %v227
    %v1004 = vpop.f32.mrf.mxu0
    %v1005 = vadd.f32 %v303, %v1004
    %v1006 = vpop.f32.mrf.mxu0
    %v1007 = vadd.f32 %v303, %v1006
    %1008 = vmatmul.bf16.gmra.mxu0 %v228
    %v1009 = vpop.f32.mrf.mxu0
    %v1010 = vadd.f32 %v303, %v1009
    %v1011 = vpop.f32.mrf.mxu0
    %v1012 = vadd.f32 %v303, %v1011
    %1013 = vmatmul.bf16.gmra.mxu0 %v229
    %v1014 = vpop.f32.mrf.mxu0
    %v1015 = vadd.f32 %v303, %v1014
    %v1016 = vpop.f32.mrf.mxu0
    %v1017 = vadd.f32 %v303, %v1016
    %1018 = vmatmul.bf16.gmra.mxu0 %v230
    %v1019 = vpop.f32.mrf.mxu0
    %v1020 = vadd.f32 %v303, %v1019
    %v1021 = vpop.f32.mrf.mxu0
    %v1022 = vadd.f32 %v303, %v1021
    %1023 = vdwg.mxu0
    %v1024 = vmax.f32 %v642, 0.0
    %v1025 = vmax.f32 %v691, 0.0
    %v1026 = vmax.f32 %v740, 0.0
    %v1027 = vmax.f32 %v789, 0.0
    %v1028 = vmax.f32 %v838, 0.0
    %v1029 = vmax.f32 %v887, 0.0
    %v1030 = vmax.f32 %v936, 0.0
    %v1031 = vmax.f32 %v985, 0.0
    %v1032 = vmax.f32 %v644, 0.0
    %v1033 = vmax.f32 %v693, 0.0
    %v1034 = vmax.f32 %v742, 0.0
    %v1035 = vmax.f32 %v791, 0.0
    %v1036 = vmax.f32 %v840, 0.0
    %v1037 = vmax.f32 %v889, 0.0
    %v1038 = vmax.f32 %v938, 0.0
    %v1039 = vmax.f32 %v987, 0.0
    %v1040 = vmax.f32 %v647, 0.0
    %v1041 = vmax.f32 %v696, 0.0
    %v1042 = vmax.f32 %v745, 0.0
    %v1043 = vmax.f32 %v794, 0.0
    %v1044 = vmax.f32 %v843, 0.0
    %v1045 = vmax.f32 %v892, 0.0
    %v1046 = vmax.f32 %v941, 0.0
    %v1047 = vmax.f32 %v990, 0.0
    %v1048 = vmax.f32 %v649, 0.0
    %v1049 = vmax.f32 %v698, 0.0
    %v1050 = vmax.f32 %v747, 0.0
    %v1051 = vmax.f32 %v796, 0.0
    %v1052 = vmax.f32 %v845, 0.0
    %v1053 = vmax.f32 %v894, 0.0
    %v1054 = vmax.f32 %v943, 0.0
    %v1055 = vmax.f32 %v992, 0.0
    %v1056 = vmax.f32 %v652, 0.0
    %v1057 = vmax.f32 %v701, 0.0
    %v1058 = vmax.f32 %v750, 0.0
    %v1059 = vmax.f32 %v799, 0.0
    %v1060 = vmax.f32 %v848, 0.0
    %v1061 = vmax.f32 %v897, 0.0
    %v1062 = vmax.f32 %v946, 0.0
    %v1063 = vmax.f32 %v995, 0.0
    %v1064 = vmax.f32 %v654, 0.0
    %v1065 = vmax.f32 %v703, 0.0
    %v1066 = vmax.f32 %v752, 0.0
    %v1067 = vmax.f32 %v801, 0.0
    %v1068 = vmax.f32 %v850, 0.0
    %v1069 = vmax.f32 %v899, 0.0
    %v1070 = vmax.f32 %v948, 0.0
    %v1071 = vmax.f32 %v997, 0.0
    %v1072 = vmax.f32 %v657, 0.0
    %v1073 = vmax.f32 %v706, 0.0
    %v1074 = vmax.f32 %v755, 0.0
    %v1075 = vmax.f32 %v804, 0.0
    %v1076 = vmax.f32 %v853, 0.0
    %v1077 = vmax.f32 %v902, 0.0
    %v1078 = vmax.f32 %v951, 0.0
    %v1079 = vmax.f32 %v1000, 0.0
    %v1080 = vmax.f32 %v659, 0.0
    %v1081 = vmax.f32 %v708, 0.0
    %v1082 = vmax.f32 %v757, 0.0
    %v1083 = vmax.f32 %v806, 0.0
    %v1084 = vmax.f32 %v855, 0.0
    %v1085 = vmax.f32 %v904, 0.0
    %v1086 = vmax.f32 %v953, 0.0
    %v1087 = vmax.f32 %v1002, 0.0
    %v1088 = vmax.f32 %v662, 0.0
    %v1089 = vmax.f32 %v711, 0.0
    %v1090 = vmax.f32 %v760, 0.0
    %v1091 = vmax.f32 %v809, 0.0
    %v1092 = vmax.f32 %v858, 0.0
    %v1093 = vmax.f32 %v907, 0.0
    %v1094 = vmax.f32 %v956, 0.0
    %v1095 = vmax.f32 %v1005, 0.0
    %v1096 = vmax.f32 %v664, 0.0
    %v1097 = vmax.f32 %v713, 0.0
    %v1098 = vmax.f32 %v762, 0.0
    %v1099 = vmax.f32 %v811, 0.0
    %v1100 = vmax.f32 %v860, 0.0
    %v1101 = vmax.f32 %v909, 0.0
    %v1102 = vmax.f32 %v958, 0.0
    %v1103 = vmax.f32 %v1007, 0.0
    %v1104 = vmax.f32 %v667, 0.0
    %v1105 = vmax.f32 %v716, 0.0
    %v1106 = vmax.f32 %v765, 0.0
    %v1107 = vmax.f32 %v814, 0.0
    %v1108 = vmax.f32 %v863, 0.0
    %v1109 = vmax.f32 %v912, 0.0
    %v1110 = vmax.f32 %v961, 0.0
    %v1111 = vmax.f32 %v1010, 0.0
    %v1112 = vmax.f32 %v669, 0.0
    %v1113 = vmax.f32 %v718, 0.0
    %v1114 = vmax.f32 %v767, 0.0
    %v1115 = vmax.f32 %v816, 0.0
    %v1116 = vmax.f32 %v865, 0.0
    %v1117 = vmax.f32 %v914, 0.0
    %v1118 = vmax.f32 %v963, 0.0
    %v1119 = vmax.f32 %v1012, 0.0
    %v1120 = vmax.f32 %v672, 0.0
    %v1121 = vmax.f32 %v721, 0.0
    %v1122 = vmax.f32 %v770, 0.0
    %v1123 = vmax.f32 %v819, 0.0
    %v1124 = vmax.f32 %v868, 0.0
    %v1125 = vmax.f32 %v917, 0.0
    %v1126 = vmax.f32 %v966, 0.0
    %v1127 = vmax.f32 %v1015, 0.0
    %v1128 = vmax.f32 %v674, 0.0
    %v1129 = vmax.f32 %v723, 0.0
    %v1130 = vmax.f32 %v772, 0.0
    %v1131 = vmax.f32 %v821, 0.0
    %v1132 = vmax.f32 %v870, 0.0
    %v1133 = vmax.f32 %v919, 0.0
    %v1134 = vmax.f32 %v968, 0.0
    %v1135 = vmax.f32 %v1017, 0.0
    %v1136 = vmax.f32 %v677, 0.0
    %v1137 = vmax.f32 %v726, 0.0
    %v1138 = vmax.f32 %v775, 0.0
    %v1139 = vmax.f32 %v824, 0.0
    %v1140 = vmax.f32 %v873, 0.0
    %v1141 = vmax.f32 %v922, 0.0
    %v1142 = vmax.f32 %v971, 0.0
    %v1143 = vmax.f32 %v1020, 0.0
    %v1144 = vmax.f32 %v679, 0.0
    %v1145 = vmax.f32 %v728, 0.0
    %v1146 = vmax.f32 %v777, 0.0
    %v1147 = vmax.f32 %v826, 0.0
    %v1148 = vmax.f32 %v875, 0.0
    %v1149 = vmax.f32 %v924, 0.0
    %v1150 = vmax.f32 %v973, 0.0
    %v1151 = vmax.f32 %v1022, 0.0
    %v1152 = vpack.c.bf16 %v1032, %v1024
    %v1153 = vpack.c.bf16 %v1033, %v1025
    %v1154 = vpack.c.bf16 %v1034, %v1026
    %v1155 = vpack.c.bf16 %v1035, %v1027
    %v1156 = vpack.c.bf16 %v1036, %v1028
    %v1157 = vpack.c.bf16 %v1037, %v1029
    %v1158 = vpack.c.bf16 %v1038, %v1030
    %v1159 = vpack.c.bf16 %v1039, %v1031
    %v1160 = vpack.c.bf16 %v1048, %v1040
    %v1161 = vpack.c.bf16 %v1049, %v1041
    %v1162 = vpack.c.bf16 %v1050, %v1042
    %v1163 = vpack.c.bf16 %v1051, %v1043
    %v1164 = vpack.c.bf16 %v1052, %v1044
    %v1165 = vpack.c.bf16 %v1053, %v1045
    %v1166 = vpack.c.bf16 %v1054, %v1046
    %v1167 = vpack.c.bf16 %v1055, %v1047
    %v1168 = vpack.c.bf16 %v1064, %v1056
    %v1169 = vpack.c.bf16 %v1065, %v1057
    %v1170 = vpack.c.bf16 %v1066, %v1058
    %v1171 = vpack.c.bf16 %v1067, %v1059
    %v1172 = vpack.c.bf16 %v1068, %v1060
    %v1173 = vpack.c.bf16 %v1069, %v1061
    %v1174 = vpack.c.bf16 %v1070, %v1062
    %v1175 = vpack.c.bf16 %v1071, %v1063
    %v1176 = vpack.c.bf16 %v1080, %v1072
    %v1177 = vpack.c.bf16 %v1081, %v1073
    %v1178 = vpack.c.bf16 %v1082, %v1074
    %v1179 = vpack.c.bf16 %v1083, %v1075
    %v1180 = vpack.c.bf16 %v1084, %v1076
    %v1181 = vpack.c.bf16 %v1085, %v1077
    %v1182 = vpack.c.bf16 %v1086, %v1078
    %v1183 = vpack.c.bf16 %v1087, %v1079
    %v1184 = vpack.c.bf16 %v1096, %v1088
    %v1185 = vpack.c.bf16 %v1097, %v1089
    %v1186 = vpack.c.bf16 %v1098, %v1090
    %v1187 = vpack.c.bf16 %v1099, %v1091
    %v1188 = vpack.c.bf16 %v1100, %v1092
    %v1189 = vpack.c.bf16 %v1101, %v1093
    %v1190 = vpack.c.bf16 %v1102, %v1094
    %v1191 = vpack.c.bf16 %v1103, %v1095
    %v1192 = vpack.c.bf16 %v1112, %v1104
    %v1193 = vpack.c.bf16 %v1113, %v1105
    %v1194 = vpack.c.bf16 %v1114, %v1106
    %v1195 = vpack.c.bf16 %v1115, %v1107
    %v1196 = vpack.c.bf16 %v1116, %v1108
    %v1197 = vpack.c.bf16 %v1117, %v1109
    %v1198 = vpack.c.bf16 %v1118, %v1110
    %v1199 = vpack.c.bf16 %v1119, %v1111
    %v1200 = vpack.c.bf16 %v1128, %v1120
    %v1201 = vpack.c.bf16 %v1129, %v1121
    %v1202 = vpack.c.bf16 %v1130, %v1122
    %v1203 = vpack.c.bf16 %v1131, %v1123
    %v1204 = vpack.c.bf16 %v1132, %v1124
    %v1205 = vpack.c.bf16 %v1133, %v1125
    %v1206 = vpack.c.bf16 %v1134, %v1126
    %v1207 = vpack.c.bf16 %v1135, %v1127
    %v1208 = vpack.c.bf16 %v1144, %v1136
    %v1209 = vpack.c.bf16 %v1145, %v1137
    %v1210 = vpack.c.bf16 %v1146, %v1138
    %v1211 = vpack.c.bf16 %v1147, %v1139
    %v1212 = vpack.c.bf16 %v1148, %v1140
    %v1213 = vpack.c.bf16 %v1149, %v1141
    %v1214 = vpack.c.bf16 %v1150, %v1142
    %v1215 = vpack.c.bf16 %v1151, %v1143
    %v1216 = vld [vmem:[#allocation4] sm:$0xf]
    %v1217 = vld [vmem:[#allocation4 + $0x4] sm:$0xf]
    %v1218 = vld [vmem:[#allocation4 + $0x8] sm:$0xf]
    %v1219 = vld [vmem:[#allocation4 + $0xc] sm:$0xf]
    %v1220 = vld [vmem:[#allocation4 + $0x10] sm:$0xf]
    %v1221 = vld [vmem:[#allocation4 + $0x14] sm:$0xf]
    %v1222 = vld [vmem:[#allocation4 + $0x18] sm:$0xf]
    %v1223 = vld [vmem:[#allocation4 + $0x1c] sm:$0xf]
    %v1224 = vld [vmem:[#allocation4 + $0x20] sm:$0xf]
    %v1225 = vld [vmem:[#allocation4 + $0x24] sm:$0xf]
    %v1226 = vld [vmem:[#allocation4 + $0x28] sm:$0xf]
    %v1227 = vld [vmem:[#allocation4 + $0x2c] sm:$0xf]
    %v1228 = vld [vmem:[#allocation4 + $0x30] sm:$0xf]
    %v1229 = vld [vmem:[#allocation4 + $0x34] sm:$0xf]
    %v1230 = vld [vmem:[#allocation4 + $0x38] sm:$0xf]
    %v1231 = vld [vmem:[#allocation4 + $0x3c] sm:$0xf]
    %v1232 = vld [vmem:[#allocation4 + $0x40] sm:$0xf]
    %v1233 = vld [vmem:[#allocation4 + $0x44] sm:$0xf]
    %v1234 = vld [vmem:[#allocation4 + $0x48] sm:$0xf]
    %v1235 = vld [vmem:[#allocation4 + $0x4c] sm:$0xf]
    %v1236 = vld [vmem:[#allocation4 + $0x50] sm:$0xf]
    %v1237 = vld [vmem:[#allocation4 + $0x54] sm:$0xf]
    %v1238 = vld [vmem:[#allocation4 + $0x58] sm:$0xf]
    %v1239 = vld [vmem:[#allocation4 + $0x5c] sm:$0xf]
    %v1240 = vld [vmem:[#allocation4 + $0x60] sm:$0xf]
    %v1241 = vld [vmem:[#allocation4 + $0x64] sm:$0xf]
    %v1242 = vld [vmem:[#allocation4 + $0x68] sm:$0xf]
    %v1243 = vld [vmem:[#allocation4 + $0x6c] sm:$0xf]
    %v1244 = vld [vmem:[#allocation4 + $0x70] sm:$0xf]
    %v1245 = vld [vmem:[#allocation4 + $0x74] sm:$0xf]
    %v1246 = vld [vmem:[#allocation4 + $0x78] sm:$0xf]
    %v1247 = vld [vmem:[#allocation4 + $0x7c] sm:$0xf]
    %v1248 = vld [vmem:[#allocation4 + $0x80] sm:$0xf]
    %v1249 = vld [vmem:[#allocation4 + $0x84] sm:$0xf]
    %v1250 = vld [vmem:[#allocation4 + $0x88] sm:$0xf]
    %v1251 = vld [vmem:[#allocation4 + $0x8c] sm:$0xf]
    %v1252 = vld [vmem:[#allocation4 + $0x90] sm:$0xf]
    %v1253 = vld [vmem:[#allocation4 + $0x94] sm:$0xf]
    %v1254 = vld [vmem:[#allocation4 + $0x98] sm:$0xf]
    %v1255 = vld [vmem:[#allocation4 + $0x9c] sm:$0xf]
    %v1256 = vld [vmem:[#allocation4 + $0xa0] sm:$0xf]
    %v1257 = vld [vmem:[#allocation4 + $0xa4] sm:$0xf]
    %v1258 = vld [vmem:[#allocation4 + $0xa8] sm:$0xf]
    %v1259 = vld [vmem:[#allocation4 + $0xac] sm:$0xf]
    %v1260 = vld [vmem:[#allocation4 + $0xb0] sm:$0xf]
    %v1261 = vld [vmem:[#allocation4 + $0xb4] sm:$0xf]
    %v1262 = vld [vmem:[#allocation4 + $0xb8] sm:$0xf]
    %v1263 = vld [vmem:[#allocation4 + $0xbc] sm:$0xf]
    %v1264 = vld [vmem:[#allocation4 + $0xc0] sm:$0xf]
    %v1265 = vld [vmem:[#allocation4 + $0xc4] sm:$0xf]
    %v1266 = vld [vmem:[#allocation4 + $0xc8] sm:$0xf]
    %v1267 = vld [vmem:[#allocation4 + $0xcc] sm:$0xf]
    %v1268 = vld [vmem:[#allocation4 + $0xd0] sm:$0xf]
    %v1269 = vld [vmem:[#allocation4 + $0xd4] sm:$0xf]
    %v1270 = vld [vmem:[#allocation4 + $0xd8] sm:$0xf]
    %v1271 = vld [vmem:[#allocation4 + $0xdc] sm:$0xf]
    %v1272 = vld [vmem:[#allocation4 + $0xe0] sm:$0xf]
    %v1273 = vld [vmem:[#allocation4 + $0xe4] sm:$0xf]
    %v1274 = vld [vmem:[#allocation4 + $0xe8] sm:$0xf]
    %v1275 = vld [vmem:[#allocation4 + $0xec] sm:$0xf]
    %v1276 = vld [vmem:[#allocation4 + $0xf0] sm:$0xf]
    %v1277 = vld [vmem:[#allocation4 + $0xf4] sm:$0xf]
    %v1278 = vld [vmem:[#allocation4 + $0xf8] sm:$0xf]
    %v1279 = vld [vmem:[#allocation4 + $0xfc] sm:$0xf]
    %v1280 = vld [vmem:[#allocation4 + $0x100] sm:$0xf]
    %v1281 = vld [vmem:[#allocation4 + $0x104] sm:$0xf]
    %v1282 = vld [vmem:[#allocation4 + $0x108] sm:$0xf]
    %v1283 = vld [vmem:[#allocation4 + $0x10c] sm:$0xf]
    %v1284 = vld [vmem:[#allocation4 + $0x110] sm:$0xf]
    %v1285 = vld [vmem:[#allocation4 + $0x114] sm:$0xf]
    %v1286 = vld [vmem:[#allocation4 + $0x118] sm:$0xf]
    %v1287 = vld [vmem:[#allocation4 + $0x11c] sm:$0xf]
    %v1288 = vld [vmem:[#allocation4 + $0x120] sm:$0xf]
    %v1289 = vld [vmem:[#allocation4 + $0x124] sm:$0xf]
    %v1290 = vld [vmem:[#allocation4 + $0x128] sm:$0xf]
    %v1291 = vld [vmem:[#allocation4 + $0x12c] sm:$0xf]
    %v1292 = vld [vmem:[#allocation4 + $0x130] sm:$0xf]
    %v1293 = vld [vmem:[#allocation4 + $0x134] sm:$0xf]
    %v1294 = vld [vmem:[#allocation4 + $0x138] sm:$0xf]
    %v1295 = vld [vmem:[#allocation4 + $0x13c] sm:$0xf]
    %v1296 = vld [vmem:[#allocation4 + $0x140] sm:$0xf]
    %v1297 = vld [vmem:[#allocation4 + $0x144] sm:$0xf]
    %v1298 = vld [vmem:[#allocation4 + $0x148] sm:$0xf]
    %v1299 = vld [vmem:[#allocation4 + $0x14c] sm:$0xf]
    %v1300 = vld [vmem:[#allocation4 + $0x150] sm:$0xf]
    %v1301 = vld [vmem:[#allocation4 + $0x154] sm:$0xf]
    %v1302 = vld [vmem:[#allocation4 + $0x158] sm:$0xf]
    %v1303 = vld [vmem:[#allocation4 + $0x15c] sm:$0xf]
    %v1304 = vld [vmem:[#allocation4 + $0x160] sm:$0xf]
    %v1305 = vld [vmem:[#allocation4 + $0x164] sm:$0xf]
    %v1306 = vld [vmem:[#allocation4 + $0x168] sm:$0xf]
    %v1307 = vld [vmem:[#allocation4 + $0x16c] sm:$0xf]
    %v1308 = vld [vmem:[#allocation4 + $0x170] sm:$0xf]
    %v1309 = vld [vmem:[#allocation4 + $0x174] sm:$0xf]
    %v1310 = vld [vmem:[#allocation4 + $0x178] sm:$0xf]
    %v1311 = vld [vmem:[#allocation4 + $0x17c] sm:$0xf]
    %v1312 = vld [vmem:[#allocation4 + $0x180] sm:$0xf]
    %v1313 = vld [vmem:[#allocation4 + $0x184] sm:$0xf]
    %v1314 = vld [vmem:[#allocation4 + $0x188] sm:$0xf]
    %v1315 = vld [vmem:[#allocation4 + $0x18c] sm:$0xf]
    %v1316 = vld [vmem:[#allocation4 + $0x190] sm:$0xf]
    %v1317 = vld [vmem:[#allocation4 + $0x194] sm:$0xf]
    %v1318 = vld [vmem:[#allocation4 + $0x198] sm:$0xf]
    %v1319 = vld [vmem:[#allocation4 + $0x19c] sm:$0xf]
    %v1320 = vld [vmem:[#allocation4 + $0x1a0] sm:$0xf]
    %v1321 = vld [vmem:[#allocation4 + $0x1a4] sm:$0xf]
    %v1322 = vld [vmem:[#allocation4 + $0x1a8] sm:$0xf]
    %v1323 = vld [vmem:[#allocation4 + $0x1ac] sm:$0xf]
    %v1324 = vld [vmem:[#allocation4 + $0x1b0] sm:$0xf]
    %v1325 = vld [vmem:[#allocation4 + $0x1b4] sm:$0xf]
    %v1326 = vld [vmem:[#allocation4 + $0x1b8] sm:$0xf]
    %v1327 = vld [vmem:[#allocation4 + $0x1bc] sm:$0xf]
    %v1328 = vld [vmem:[#allocation4 + $0x1c0] sm:$0xf]
    %v1329 = vld [vmem:[#allocation4 + $0x1c4] sm:$0xf]
    %v1330 = vld [vmem:[#allocation4 + $0x1c8] sm:$0xf]
    %v1331 = vld [vmem:[#allocation4 + $0x1cc] sm:$0xf]
    %v1332 = vld [vmem:[#allocation4 + $0x1d0] sm:$0xf]
    %v1333 = vld [vmem:[#allocation4 + $0x1d4] sm:$0xf]
    %v1334 = vld [vmem:[#allocation4 + $0x1d8] sm:$0xf]
    %v1335 = vld [vmem:[#allocation4 + $0x1dc] sm:$0xf]
    %v1336 = vld [vmem:[#allocation4 + $0x1e0] sm:$0xf]
    %v1337 = vld [vmem:[#allocation4 + $0x1e4] sm:$0xf]
    %v1338 = vld [vmem:[#allocation4 + $0x1e8] sm:$0xf]
    %v1339 = vld [vmem:[#allocation4 + $0x1ec] sm:$0xf]
    %v1340 = vld [vmem:[#allocation4 + $0x1f0] sm:$0xf]
    %v1341 = vld [vmem:[#allocation4 + $0x1f4] sm:$0xf]
    %v1342 = vld [vmem:[#allocation4 + $0x1f8] sm:$0xf]
    %v1343 = vld [vmem:[#allocation4 + $0x1fc] sm:$0xf]
    %v1345 = vperm.slane %v67, 0
    %v1475 = vunpack.c.l.b16 %v1216
    %v1476 = vunpack.c.l.b16 %v1217
    %v1477 = vunpack.c.l.b16 %v1218
    %v1478 = vunpack.c.l.b16 %v1219
    %v1479 = vunpack.c.l.b16 %v1220
    %v1480 = vunpack.c.l.b16 %v1221
    %v1481 = vunpack.c.l.b16 %v1222
    %v1482 = vunpack.c.l.b16 %v1223
    %v1483 = vunpack.c.l.b16 %v1224
    %v1484 = vunpack.c.l.b16 %v1225
    %v1485 = vunpack.c.l.b16 %v1226
    %v1486 = vunpack.c.l.b16 %v1227
    %v1487 = vunpack.c.l.b16 %v1228
    %v1488 = vunpack.c.l.b16 %v1229
    %v1489 = vunpack.c.l.b16 %v1230
    %v1490 = vunpack.c.l.b16 %v1231
    %v1491 = vunpack.c.l.b16 %v1232
    %v1492 = vunpack.c.l.b16 %v1233
    %v1493 = vunpack.c.l.b16 %v1234
    %v1494 = vunpack.c.l.b16 %v1235
    %v1495 = vunpack.c.l.b16 %v1236
    %v1496 = vunpack.c.l.b16 %v1237
    %v1497 = vunpack.c.l.b16 %v1238
    %v1498 = vunpack.c.l.b16 %v1239
    %v1499 = vunpack.c.l.b16 %v1240
    %v1500 = vunpack.c.l.b16 %v1241
    %v1501 = vunpack.c.l.b16 %v1242
    %v1502 = vunpack.c.l.b16 %v1243
    %v1503 = vunpack.c.l.b16 %v1244
    %v1504 = vunpack.c.l.b16 %v1245
    %v1505 = vunpack.c.l.b16 %v1246
    %v1506 = vunpack.c.l.b16 %v1247
    %v1507 = vunpack.c.l.b16 %v1248
    %v1508 = vunpack.c.l.b16 %v1249
    %v1509 = vunpack.c.l.b16 %v1250
    %v1510 = vunpack.c.l.b16 %v1251
    %v1511 = vunpack.c.l.b16 %v1252
    %v1512 = vunpack.c.l.b16 %v1253
    %v1513 = vunpack.c.l.b16 %v1254
    %v1514 = vunpack.c.l.b16 %v1255
    %v1515 = vunpack.c.l.b16 %v1256
    %v1516 = vunpack.c.l.b16 %v1257
    %v1517 = vunpack.c.l.b16 %v1258
    %v1518 = vunpack.c.l.b16 %v1259
    %v1519 = vunpack.c.l.b16 %v1260
    %v1520 = vunpack.c.l.b16 %v1261
    %v1521 = vunpack.c.l.b16 %v1262
    %v1522 = vunpack.c.l.b16 %v1263
    %v1523 = vunpack.c.l.b16 %v1264
    %v1524 = vunpack.c.l.b16 %v1265
    %v1525 = vunpack.c.l.b16 %v1266
    %v1526 = vunpack.c.l.b16 %v1267
    %v1527 = vunpack.c.l.b16 %v1268
    %v1528 = vunpack.c.l.b16 %v1269
    %v1529 = vunpack.c.l.b16 %v1270
    %v1530 = vunpack.c.l.b16 %v1271
    %v1531 = vunpack.c.l.b16 %v1272
    %v1532 = vunpack.c.l.b16 %v1273
    %v1533 = vunpack.c.l.b16 %v1274
    %v1534 = vunpack.c.l.b16 %v1275
    %v1535 = vunpack.c.l.b16 %v1276
    %v1536 = vunpack.c.l.b16 %v1277
    %v1537 = vunpack.c.l.b16 %v1278
    %v1538 = vunpack.c.l.b16 %v1279
    %v1539 = vunpack.c.l.b16 %v1280
    %v1540 = vunpack.c.l.b16 %v1281
    %v1541 = vunpack.c.l.b16 %v1282
    %v1542 = vunpack.c.l.b16 %v1283
    %v1543 = vunpack.c.l.b16 %v1284
    %v1544 = vunpack.c.l.b16 %v1285
    %v1545 = vunpack.c.l.b16 %v1286
    %v1546 = vunpack.c.l.b16 %v1287
    %v1547 = vunpack.c.l.b16 %v1288
    %v1548 = vunpack.c.l.b16 %v1289
    %v1549 = vunpack.c.l.b16 %v1290
    %v1550 = vunpack.c.l.b16 %v1291
    %v1551 = vunpack.c.l.b16 %v1292
    %v1552 = vunpack.c.l.b16 %v1293
    %v1553 = vunpack.c.l.b16 %v1294
    %v1554 = vunpack.c.l.b16 %v1295
    %v1555 = vunpack.c.l.b16 %v1296
    %v1556 = vunpack.c.l.b16 %v1297
    %v1557 = vunpack.c.l.b16 %v1298
    %v1558 = vunpack.c.l.b16 %v1299
    %v1559 = vunpack.c.l.b16 %v1300
    %v1560 = vunpack.c.l.b16 %v1301
    %v1561 = vunpack.c.l.b16 %v1302
    %v1562 = vunpack.c.l.b16 %v1303
    %v1563 = vunpack.c.l.b16 %v1304
    %v1564 = vunpack.c.l.b16 %v1305
    %v1565 = vunpack.c.l.b16 %v1306
    %v1566 = vunpack.c.l.b16 %v1307
    %v1567 = vunpack.c.l.b16 %v1308
    %v1568 = vunpack.c.l.b16 %v1309
    %v1569 = vunpack.c.l.b16 %v1310
    %v1570 = vunpack.c.l.b16 %v1311
    %v1571 = vunpack.c.l.b16 %v1312
    %v1572 = vunpack.c.l.b16 %v1313
    %v1573 = vunpack.c.l.b16 %v1314
    %v1574 = vunpack.c.l.b16 %v1315
    %v1575 = vunpack.c.l.b16 %v1316
    %v1576 = vunpack.c.l.b16 %v1317
    %v1577 = vunpack.c.l.b16 %v1318
    %v1578 = vunpack.c.l.b16 %v1319
    %v1579 = vunpack.c.l.b16 %v1320
    %v1580 = vunpack.c.l.b16 %v1321
    %v1581 = vunpack.c.l.b16 %v1322
    %v1582 = vunpack.c.l.b16 %v1323
    %v1583 = vunpack.c.l.b16 %v1324
    %v1584 = vunpack.c.l.b16 %v1325
    %v1585 = vunpack.c.l.b16 %v1326
    %v1586 = vunpack.c.l.b16 %v1327
    %v1587 = vunpack.c.l.b16 %v1328
    %v1588 = vunpack.c.l.b16 %v1329
    %v1589 = vunpack.c.l.b16 %v1330
    %v1590 = vunpack.c.l.b16 %v1331
    %v1591 = vunpack.c.l.b16 %v1332
    %v1592 = vunpack.c.l.b16 %v1333
    %v1593 = vunpack.c.l.b16 %v1334
    %v1594 = vunpack.c.l.b16 %v1335
    %v1595 = vunpack.c.l.b16 %v1336
    %v1596 = vunpack.c.l.b16 %v1337
    %v1597 = vunpack.c.l.b16 %v1338
    %v1598 = vunpack.c.l.b16 %v1339
    %v1599 = vunpack.c.l.b16 %v1340
    %v1600 = vunpack.c.l.b16 %v1341
    %v1601 = vunpack.c.l.b16 %v1342
    %v1602 = vunpack.c.l.b16 %v1343
    %v1603 = vpack.c.b16 %v1476, %v1475
    %v1604 = vpack.c.b16 %v1478, %v1477
    %v1605 = vpack.c.b16 %v1480, %v1479
    %v1606 = vpack.c.b16 %v1482, %v1481
    %v1607 = vpack.c.b16 %v1484, %v1483
    %v1608 = vpack.c.b16 %v1486, %v1485
    %v1609 = vpack.c.b16 %v1488, %v1487
    %v1610 = vpack.c.b16 %v1490, %v1489
    %v1611 = vpack.c.b16 %v1492, %v1491
    %v1612 = vpack.c.b16 %v1494, %v1493
    %v1613 = vpack.c.b16 %v1496, %v1495
    %v1614 = vpack.c.b16 %v1498, %v1497
    %v1615 = vpack.c.b16 %v1500, %v1499
    %v1616 = vpack.c.b16 %v1502, %v1501
    %v1617 = vpack.c.b16 %v1504, %v1503
    %v1618 = vpack.c.b16 %v1506, %v1505
    %v1619 = vpack.c.b16 %v1508, %v1507
    %v1620 = vpack.c.b16 %v1510, %v1509
    %v1621 = vpack.c.b16 %v1512, %v1511
    %v1622 = vpack.c.b16 %v1514, %v1513
    %v1623 = vpack.c.b16 %v1516, %v1515
    %v1624 = vpack.c.b16 %v1518, %v1517
    %v1625 = vpack.c.b16 %v1520, %v1519
    %v1626 = vpack.c.b16 %v1522, %v1521
    %v1627 = vpack.c.b16 %v1524, %v1523
    %v1628 = vpack.c.b16 %v1526, %v1525
    %v1629 = vpack.c.b16 %v1528, %v1527
    %v1630 = vpack.c.b16 %v1530, %v1529
    %v1631 = vpack.c.b16 %v1532, %v1531
    %v1632 = vpack.c.b16 %v1534, %v1533
    %v1633 = vpack.c.b16 %v1536, %v1535
    %v1634 = vpack.c.b16 %v1538, %v1537
    %v1635 = vpack.c.b16 %v1540, %v1539
    %v1636 = vpack.c.b16 %v1542, %v1541
    %v1637 = vpack.c.b16 %v1544, %v1543
    %v1638 = vpack.c.b16 %v1546, %v1545
    %v1639 = vpack.c.b16 %v1548, %v1547
    %v1640 = vpack.c.b16 %v1550, %v1549
    %v1641 = vpack.c.b16 %v1552, %v1551
    %v1642 = vpack.c.b16 %v1554, %v1553
    %v1643 = vpack.c.b16 %v1556, %v1555
    %v1644 = vpack.c.b16 %v1558, %v1557
    %v1645 = vpack.c.b16 %v1560, %v1559
    %v1646 = vpack.c.b16 %v1562, %v1561
    %v1647 = vpack.c.b16 %v1564, %v1563
    %v1648 = vpack.c.b16 %v1566, %v1565
    %v1649 = vpack.c.b16 %v1568, %v1567
    %v1650 = vpack.c.b16 %v1570, %v1569
    %v1651 = vpack.c.b16 %v1572, %v1571
    %v1652 = vpack.c.b16 %v1574, %v1573
    %v1653 = vpack.c.b16 %v1576, %v1575
    %v1654 = vpack.c.b16 %v1578, %v1577
    %v1655 = vpack.c.b16 %v1580, %v1579
    %v1656 = vpack.c.b16 %v1582, %v1581
    %v1657 = vpack.c.b16 %v1584, %v1583
    %v1658 = vpack.c.b16 %v1586, %v1585
    %v1659 = vpack.c.b16 %v1588, %v1587
    %v1660 = vpack.c.b16 %v1590, %v1589
    %v1661 = vpack.c.b16 %v1592, %v1591
    %v1662 = vpack.c.b16 %v1594, %v1593
    %v1663 = vpack.c.b16 %v1596, %v1595
    %v1664 = vpack.c.b16 %v1598, %v1597
    %v1665 = vpack.c.b16 %v1600, %v1599
    %v1666 = vpack.c.b16 %v1602, %v1601
    %1731 = vmatpush.bf16.msra.mxu0 %v1610
    %1732 = vmatpush.bf16.msra.mxu0 %v1609
    %1733 = vmatpush.bf16.msra.mxu0 %v1608
    %1734 = vmatpush.bf16.msra.mxu0 %v1607
    %1735 = vmatpush.bf16.msra.mxu0 %v1606
    %1736 = vmatpush.bf16.msra.mxu0 %v1605
    %1737 = vmatpush.bf16.msra.mxu0 %v1604
    %1738 = vmatpush.bf16.msra.mxu0 %v1603
    %1739 = vmatmul.bf16.gmra.mxu0 %v1152
    %v1740 = vpop.f32.mrf.mxu0
    %v1741 = vadd.f32 %v1345, %v1740
    %v1742 = vpop.f32.mrf.mxu0
    %v1743 = vadd.f32 %v1345, %v1742
    %1744 = vmatmul.bf16.gmra.mxu0 %v1160
    %v1745 = vpop.f32.mrf.mxu0
    %v1746 = vadd.f32 %v1345, %v1745
    %v1747 = vpop.f32.mrf.mxu0
    %v1748 = vadd.f32 %v1345, %v1747
    %1749 = vmatmul.bf16.gmra.mxu0 %v1168
    %v1750 = vpop.f32.mrf.mxu0
    %v1751 = vadd.f32 %v1345, %v1750
    %v1752 = vpop.f32.mrf.mxu0
    %v1753 = vadd.f32 %v1345, %v1752
    %1754 = vmatmul.bf16.gmra.mxu0 %v1176
    %v1755 = vpop.f32.mrf.mxu0
    %v1756 = vadd.f32 %v1345, %v1755
    %v1757 = vpop.f32.mrf.mxu0
    %v1758 = vadd.f32 %v1345, %v1757
    %1759 = vmatmul.bf16.gmra.mxu0 %v1184
    %v1760 = vpop.f32.mrf.mxu0
    %v1761 = vadd.f32 %v1345, %v1760
    %v1762 = vpop.f32.mrf.mxu0
    %v1763 = vadd.f32 %v1345, %v1762
    %1764 = vmatmul.bf16.gmra.mxu0 %v1192
    %v1765 = vpop.f32.mrf.mxu0
    %v1766 = vadd.f32 %v1345, %v1765
    %v1767 = vpop.f32.mrf.mxu0
    %v1768 = vadd.f32 %v1345, %v1767
    %1769 = vmatmul.bf16.gmra.mxu0 %v1200
    %v1770 = vpop.f32.mrf.mxu0
    %v1771 = vadd.f32 %v1345, %v1770
    %v1772 = vpop.f32.mrf.mxu0
    %v1773 = vadd.f32 %v1345, %v1772
    %1774 = vmatmul.bf16.gmra.mxu0 %v1208
    %v1775 = vpop.f32.mrf.mxu0
    %v1776 = vadd.f32 %v1345, %v1775
    %v1777 = vpop.f32.mrf.mxu0
    %v1778 = vadd.f32 %v1345, %v1777
    %1779 = vdwg.mxu0
    %1780 = vmatpush.bf16.msra.mxu0 %v1618
    %1781 = vmatpush.bf16.msra.mxu0 %v1617
    %1782 = vmatpush.bf16.msra.mxu0 %v1616
    %1783 = vmatpush.bf16.msra.mxu0 %v1615
    %1784 = vmatpush.bf16.msra.mxu0 %v1614
    %1785 = vmatpush.bf16.msra.mxu0 %v1613
    %1786 = vmatpush.bf16.msra.mxu0 %v1612
    %1787 = vmatpush.bf16.msra.mxu0 %v1611
    %1788 = vmatmul.bf16.gmra.mxu0 %v1153
    %v1789 = vpop.f32.mrf.mxu0
    %v1790 = vadd.f32 %v1741, %v1789
    %v1791 = vpop.f32.mrf.mxu0
    %v1792 = vadd.f32 %v1743, %v1791
    %1793 = vmatmul.bf16.gmra.mxu0 %v1161
    %v1794 = vpop.f32.mrf.mxu0
    %v1795 = vadd.f32 %v1746, %v1794
    %v1796 = vpop.f32.mrf.mxu0
    %v1797 = vadd.f32 %v1748, %v1796
    %1798 = vmatmul.bf16.gmra.mxu0 %v1169
    %v1799 = vpop.f32.mrf.mxu0
    %v1800 = vadd.f32 %v1751, %v1799
    %v1801 = vpop.f32.mrf.mxu0
    %v1802 = vadd.f32 %v1753, %v1801
    %1803 = vmatmul.bf16.gmra.mxu0 %v1177
    %v1804 = vpop.f32.mrf.mxu0
    %v1805 = vadd.f32 %v1756, %v1804
    %v1806 = vpop.f32.mrf.mxu0
    %v1807 = vadd.f32 %v1758, %v1806
    %1808 = vmatmul.bf16.gmra.mxu0 %v1185
    %v1809 = vpop.f32.mrf.mxu0
    %v1810 = vadd.f32 %v1761, %v1809
    %v1811 = vpop.f32.mrf.mxu0
    %v1812 = vadd.f32 %v1763, %v1811
    %1813 = vmatmul.bf16.gmra.mxu0 %v1193
    %v1814 = vpop.f32.mrf.mxu0
    %v1815 = vadd.f32 %v1766, %v1814
    %v1816 = vpop.f32.mrf.mxu0
    %v1817 = vadd.f32 %v1768, %v1816
    %1818 = vmatmul.bf16.gmra.mxu0 %v1201
    %v1819 = vpop.f32.mrf.mxu0
    %v1820 = vadd.f32 %v1771, %v1819
    %v1821 = vpop.f32.mrf.mxu0
    %v1822 = vadd.f32 %v1773, %v1821
    %1823 = vmatmul.bf16.gmra.mxu0 %v1209
    %v1824 = vpop.f32.mrf.mxu0
    %v1825 = vadd.f32 %v1776, %v1824
    %v1826 = vpop.f32.mrf.mxu0
    %v1827 = vadd.f32 %v1778, %v1826
    %1828 = vdwg.mxu0
    %1829 = vmatpush.bf16.msra.mxu0 %v1626
    %1830 = vmatpush.bf16.msra.mxu0 %v1625
    %1831 = vmatpush.bf16.msra.mxu0 %v1624
    %1832 = vmatpush.bf16.msra.mxu0 %v1623
    %1833 = vmatpush.bf16.msra.mxu0 %v1622
    %1834 = vmatpush.bf16.msra.mxu0 %v1621
    %1835 = vmatpush.bf16.msra.mxu0 %v1620
    %1836 = vmatpush.bf16.msra.mxu0 %v1619
    %1837 = vmatmul.bf16.gmra.mxu0 %v1154
    %v1838 = vpop.f32.mrf.mxu0
    %v1839 = vadd.f32 %v1790, %v1838
    %v1840 = vpop.f32.mrf.mxu0
    %v1841 = vadd.f32 %v1792, %v1840
    %1842 = vmatmul.bf16.gmra.mxu0 %v1162
    %v1843 = vpop.f32.mrf.mxu0
    %v1844 = vadd.f32 %v1795, %v1843
    %v1845 = vpop.f32.mrf.mxu0
    %v1846 = vadd.f32 %v1797, %v1845
    %1847 = vmatmul.bf16.gmra.mxu0 %v1170
    %v1848 = vpop.f32.mrf.mxu0
    %v1849 = vadd.f32 %v1800, %v1848
    %v1850 = vpop.f32.mrf.mxu0
    %v1851 = vadd.f32 %v1802, %v1850
    %1852 = vmatmul.bf16.gmra.mxu0 %v1178
    %v1853 = vpop.f32.mrf.mxu0
    %v1854 = vadd.f32 %v1805, %v1853
    %v1855 = vpop.f32.mrf.mxu0
    %v1856 = vadd.f32 %v1807, %v1855
    %1857 = vmatmul.bf16.gmra.mxu0 %v1186
    %v1858 = vpop.f32.mrf.mxu0
    %v1859 = vadd.f32 %v1810, %v1858
    %v1860 = vpop.f32.mrf.mxu0
    %v1861 = vadd.f32 %v1812, %v1860
    %1862 = vmatmul.bf16.gmra.mxu0 %v1194
    %v1863 = vpop.f32.mrf.mxu0
    %v1864 = vadd.f32 %v1815, %v1863
    %v1865 = vpop.f32.mrf.mxu0
    %v1866 = vadd.f32 %v1817, %v1865
    %1867 = vmatmul.bf16.gmra.mxu0 %v1202
    %v1868 = vpop.f32.mrf.mxu0
    %v1869 = vadd.f32 %v1820, %v1868
    %v1870 = vpop.f32.mrf.mxu0
    %v1871 = vadd.f32 %v1822, %v1870
    %1872 = vmatmul.bf16.gmra.mxu0 %v1210
    %v1873 = vpop.f32.mrf.mxu0
    %v1874 = vadd.f32 %v1825, %v1873
    %v1875 = vpop.f32.mrf.mxu0
    %v1876 = vadd.f32 %v1827, %v1875
    %1877 = vdwg.mxu0
    %1878 = vmatpush.bf16.msra.mxu0 %v1634
    %1879 = vmatpush.bf16.msra.mxu0 %v1633
    %1880 = vmatpush.bf16.msra.mxu0 %v1632
    %1881 = vmatpush.bf16.msra.mxu0 %v1631
    %1882 = vmatpush.bf16.msra.mxu0 %v1630
    %1883 = vmatpush.bf16.msra.mxu0 %v1629
    %1884 = vmatpush.bf16.msra.mxu0 %v1628
    %1885 = vmatpush.bf16.msra.mxu0 %v1627
    %1886 = vmatmul.bf16.gmra.mxu0 %v1155
    %v1887 = vpop.f32.mrf.mxu0
    %v1888 = vadd.f32 %v1839, %v1887
    %v1889 = vpop.f32.mrf.mxu0
    %v1890 = vadd.f32 %v1841, %v1889
    %1891 = vmatmul.bf16.gmra.mxu0 %v1163
    %v1892 = vpop.f32.mrf.mxu0
    %v1893 = vadd.f32 %v1844, %v1892
    %v1894 = vpop.f32.mrf.mxu0
    %v1895 = vadd.f32 %v1846, %v1894
    %1896 = vmatmul.bf16.gmra.mxu0 %v1171
    %v1897 = vpop.f32.mrf.mxu0
    %v1898 = vadd.f32 %v1849, %v1897
    %v1899 = vpop.f32.mrf.mxu0
    %v1900 = vadd.f32 %v1851, %v1899
    %1901 = vmatmul.bf16.gmra.mxu0 %v1179
    %v1902 = vpop.f32.mrf.mxu0
    %v1903 = vadd.f32 %v1854, %v1902
    %v1904 = vpop.f32.mrf.mxu0
    %v1905 = vadd.f32 %v1856, %v1904
    %1906 = vmatmul.bf16.gmra.mxu0 %v1187
    %v1907 = vpop.f32.mrf.mxu0
    %v1908 = vadd.f32 %v1859, %v1907
    %v1909 = vpop.f32.mrf.mxu0
    %v1910 = vadd.f32 %v1861, %v1909
    %1911 = vmatmul.bf16.gmra.mxu0 %v1195
    %v1912 = vpop.f32.mrf.mxu0
    %v1913 = vadd.f32 %v1864, %v1912
    %v1914 = vpop.f32.mrf.mxu0
    %v1915 = vadd.f32 %v1866, %v1914
    %1916 = vmatmul.bf16.gmra.mxu0 %v1203
    %v1917 = vpop.f32.mrf.mxu0
    %v1918 = vadd.f32 %v1869, %v1917
    %v1919 = vpop.f32.mrf.mxu0
    %v1920 = vadd.f32 %v1871, %v1919
    %1921 = vmatmul.bf16.gmra.mxu0 %v1211
    %v1922 = vpop.f32.mrf.mxu0
    %v1923 = vadd.f32 %v1874, %v1922
    %v1924 = vpop.f32.mrf.mxu0
    %v1925 = vadd.f32 %v1876, %v1924
    %1926 = vdwg.mxu0
    %1927 = vmatpush.bf16.msra.mxu0 %v1642
    %1928 = vmatpush.bf16.msra.mxu0 %v1641
    %1929 = vmatpush.bf16.msra.mxu0 %v1640
    %1930 = vmatpush.bf16.msra.mxu0 %v1639
    %1931 = vmatpush.bf16.msra.mxu0 %v1638
    %1932 = vmatpush.bf16.msra.mxu0 %v1637
    %1933 = vmatpush.bf16.msra.mxu0 %v1636
    %1934 = vmatpush.bf16.msra.mxu0 %v1635
    %1935 = vmatmul.bf16.gmra.mxu0 %v1156
    %v1936 = vpop.f32.mrf.mxu0
    %v1937 = vadd.f32 %v1888, %v1936
    %v1938 = vpop.f32.mrf.mxu0
    %v1939 = vadd.f32 %v1890, %v1938
    %1940 = vmatmul.bf16.gmra.mxu0 %v1164
    %v1941 = vpop.f32.mrf.mxu0
    %v1942 = vadd.f32 %v1893, %v1941
    %v1943 = vpop.f32.mrf.mxu0
    %v1944 = vadd.f32 %v1895, %v1943
    %1945 = vmatmul.bf16.gmra.mxu0 %v1172
    %v1946 = vpop.f32.mrf.mxu0
    %v1947 = vadd.f32 %v1898, %v1946
    %v1948 = vpop.f32.mrf.mxu0
    %v1949 = vadd.f32 %v1900, %v1948
    %1950 = vmatmul.bf16.gmra.mxu0 %v1180
    %v1951 = vpop.f32.mrf.mxu0
    %v1952 = vadd.f32 %v1903, %v1951
    %v1953 = vpop.f32.mrf.mxu0
    %v1954 = vadd.f32 %v1905, %v1953
    %1955 = vmatmul.bf16.gmra.mxu0 %v1188
    %v1956 = vpop.f32.mrf.mxu0
    %v1957 = vadd.f32 %v1908, %v1956
    %v1958 = vpop.f32.mrf.mxu0
    %v1959 = vadd.f32 %v1910, %v1958
    %1960 = vmatmul.bf16.gmra.mxu0 %v1196
    %v1961 = vpop.f32.mrf.mxu0
    %v1962 = vadd.f32 %v1913, %v1961
    %v1963 = vpop.f32.mrf.mxu0
    %v1964 = vadd.f32 %v1915, %v1963
    %1965 = vmatmul.bf16.gmra.mxu0 %v1204
    %v1966 = vpop.f32.mrf.mxu0
    %v1967 = vadd.f32 %v1918, %v1966
    %v1968 = vpop.f32.mrf.mxu0
    %v1969 = vadd.f32 %v1920, %v1968
    %1970 = vmatmul.bf16.gmra.mxu0 %v1212
    %v1971 = vpop.f32.mrf.mxu0
    %v1972 = vadd.f32 %v1923, %v1971
    %v1973 = vpop.f32.mrf.mxu0
    %v1974 = vadd.f32 %v1925, %v1973
    %1975 = vdwg.mxu0
    %1976 = vmatpush.bf16.msra.mxu0 %v1650
    %1977 = vmatpush.bf16.msra.mxu0 %v1649
    %1978 = vmatpush.bf16.msra.mxu0 %v1648
    %1979 = vmatpush.bf16.msra.mxu0 %v1647
    %1980 = vmatpush.bf16.msra.mxu0 %v1646
    %1981 = vmatpush.bf16.msra.mxu0 %v1645
    %1982 = vmatpush.bf16.msra.mxu0 %v1644
    %1983 = vmatpush.bf16.msra.mxu0 %v1643
    %1984 = vmatmul.bf16.gmra.mxu0 %v1157
    %v1985 = vpop.f32.mrf.mxu0
    %v1986 = vadd.f32 %v1937, %v1985
    %v1987 = vpop.f32.mrf.mxu0
    %v1988 = vadd.f32 %v1939, %v1987
    %1989 = vmatmul.bf16.gmra.mxu0 %v1165
    %v1990 = vpop.f32.mrf.mxu0
    %v1991 = vadd.f32 %v1942, %v1990
    %v1992 = vpop.f32.mrf.mxu0
    %v1993 = vadd.f32 %v1944, %v1992
    %1994 = vmatmul.bf16.gmra.mxu0 %v1173
    %v1995 = vpop.f32.mrf.mxu0
    %v1996 = vadd.f32 %v1947, %v1995
    %v1997 = vpop.f32.mrf.mxu0
    %v1998 = vadd.f32 %v1949, %v1997
    %1999 = vmatmul.bf16.gmra.mxu0 %v1181
    %v2000 = vpop.f32.mrf.mxu0
    %v2001 = vadd.f32 %v1952, %v2000
    %v2002 = vpop.f32.mrf.mxu0
    %v2003 = vadd.f32 %v1954, %v2002
    %2004 = vmatmul.bf16.gmra.mxu0 %v1189
    %v2005 = vpop.f32.mrf.mxu0
    %v2006 = vadd.f32 %v1957, %v2005
    %v2007 = vpop.f32.mrf.mxu0
    %v2008 = vadd.f32 %v1959, %v2007
    %2009 = vmatmul.bf16.gmra.mxu0 %v1197
    %v2010 = vpop.f32.mrf.mxu0
    %v2011 = vadd.f32 %v1962, %v2010
    %v2012 = vpop.f32.mrf.mxu0
    %v2013 = vadd.f32 %v1964, %v2012
    %2014 = vmatmul.bf16.gmra.mxu0 %v1205
    %v2015 = vpop.f32.mrf.mxu0
    %v2016 = vadd.f32 %v1967, %v2015
    %v2017 = vpop.f32.mrf.mxu0
    %v2018 = vadd.f32 %v1969, %v2017
    %2019 = vmatmul.bf16.gmra.mxu0 %v1213
    %v2020 = vpop.f32.mrf.mxu0
    %v2021 = vadd.f32 %v1972, %v2020
    %v2022 = vpop.f32.mrf.mxu0
    %v2023 = vadd.f32 %v1974, %v2022
    %2024 = vdwg.mxu0
    %2025 = vmatpush.bf16.msra.mxu0 %v1658
    %2026 = vmatpush.bf16.msra.mxu0 %v1657
    %2027 = vmatpush.bf16.msra.mxu0 %v1656
    %2028 = vmatpush.bf16.msra.mxu0 %v1655
    %2029 = vmatpush.bf16.msra.mxu0 %v1654
    %2030 = vmatpush.bf16.msra.mxu0 %v1653
    %2031 = vmatpush.bf16.msra.mxu0 %v1652
    %2032 = vmatpush.bf16.msra.mxu0 %v1651
    %2033 = vmatmul.bf16.gmra.mxu0 %v1158
    %v2034 = vpop.f32.mrf.mxu0
    %v2035 = vadd.f32 %v1986, %v2034
    %v2036 = vpop.f32.mrf.mxu0
    %v2037 = vadd.f32 %v1988, %v2036
    %2038 = vmatmul.bf16.gmra.mxu0 %v1166
    %v2039 = vpop.f32.mrf.mxu0
    %v2040 = vadd.f32 %v1991, %v2039
    %v2041 = vpop.f32.mrf.mxu0
    %v2042 = vadd.f32 %v1993, %v2041
    %2043 = vmatmul.bf16.gmra.mxu0 %v1174
    %v2044 = vpop.f32.mrf.mxu0
    %v2045 = vadd.f32 %v1996, %v2044
    %v2046 = vpop.f32.mrf.mxu0
    %v2047 = vadd.f32 %v1998, %v2046
    %2048 = vmatmul.bf16.gmra.mxu0 %v1182
    %v2049 = vpop.f32.mrf.mxu0
    %v2050 = vadd.f32 %v2001, %v2049
    %v2051 = vpop.f32.mrf.mxu0
    %v2052 = vadd.f32 %v2003, %v2051
    %2053 = vmatmul.bf16.gmra.mxu0 %v1190
    %v2054 = vpop.f32.mrf.mxu0
    %v2055 = vadd.f32 %v2006, %v2054
    %v2056 = vpop.f32.mrf.mxu0
    %v2057 = vadd.f32 %v2008, %v2056
    %2058 = vmatmul.bf16.gmra.mxu0 %v1198
    %v2059 = vpop.f32.mrf.mxu0
    %v2060 = vadd.f32 %v2011, %v2059
    %v2061 = vpop.f32.mrf.mxu0
    %v2062 = vadd.f32 %v2013, %v2061
    %2063 = vmatmul.bf16.gmra.mxu0 %v1206
    %v2064 = vpop.f32.mrf.mxu0
    %v2065 = vadd.f32 %v2016, %v2064
    %v2066 = vpop.f32.mrf.mxu0
    %v2067 = vadd.f32 %v2018, %v2066
    %2068 = vmatmul.bf16.gmra.mxu0 %v1214
    %v2069 = vpop.f32.mrf.mxu0
    %v2070 = vadd.f32 %v2021, %v2069
    %v2071 = vpop.f32.mrf.mxu0
    %v2072 = vadd.f32 %v2023, %v2071
    %2073 = vdwg.mxu0
    %2074 = vmatpush.bf16.msra.mxu0 %v1666
    %2075 = vmatpush.bf16.msra.mxu0 %v1665
    %2076 = vmatpush.bf16.msra.mxu0 %v1664
    %2077 = vmatpush.bf16.msra.mxu0 %v1663
    %2078 = vmatpush.bf16.msra.mxu0 %v1662
    %2079 = vmatpush.bf16.msra.mxu0 %v1661
    %2080 = vmatpush.bf16.msra.mxu0 %v1660
    %2081 = vmatpush.bf16.msra.mxu0 %v1659
    %2082 = vmatmul.bf16.gmra.mxu0 %v1159
    %v2083 = vpop.f32.mrf.mxu0
    %v2084 = vadd.f32 %v2035, %v2083
    %v2085 = vpop.f32.mrf.mxu0
    %v2086 = vadd.f32 %v2037, %v2085
    %2087 = vmatmul.bf16.gmra.mxu0 %v1167
    %v2088 = vpop.f32.mrf.mxu0
    %v2089 = vadd.f32 %v2040, %v2088
    %v2090 = vpop.f32.mrf.mxu0
    %v2091 = vadd.f32 %v2042, %v2090
    %2092 = vmatmul.bf16.gmra.mxu0 %v1175
    %v2093 = vpop.f32.mrf.mxu0
    %v2094 = vadd.f32 %v2045, %v2093
    %v2095 = vpop.f32.mrf.mxu0
    %v2096 = vadd.f32 %v2047, %v2095
    %2097 = vmatmul.bf16.gmra.mxu0 %v1183
    %v2098 = vpop.f32.mrf.mxu0
    %v2099 = vadd.f32 %v2050, %v2098
    %v2100 = vpop.f32.mrf.mxu0
    %v2101 = vadd.f32 %v2052, %v2100
    %2102 = vmatmul.bf16.gmra.mxu0 %v1191
    %v2103 = vpop.f32.mrf.mxu0
    %v2104 = vadd.f32 %v2055, %v2103
    %v2105 = vpop.f32.mrf.mxu0
    %v2106 = vadd.f32 %v2057, %v2105
    %2107 = vmatmul.bf16.gmra.mxu0 %v1199
    %v2108 = vpop.f32.mrf.mxu0
    %v2109 = vadd.f32 %v2060, %v2108
    %v2110 = vpop.f32.mrf.mxu0
    %v2111 = vadd.f32 %v2062, %v2110
    %2112 = vmatmul.bf16.gmra.mxu0 %v1207
    %v2113 = vpop.f32.mrf.mxu0
    %v2114 = vadd.f32 %v2065, %v2113
    %v2115 = vpop.f32.mrf.mxu0
    %v2116 = vadd.f32 %v2067, %v2115
    %2117 = vmatmul.bf16.gmra.mxu0 %v1215
    %v2118 = vpop.f32.mrf.mxu0
    %v2119 = vadd.f32 %v2070, %v2118
    %v2120 = vpop.f32.mrf.mxu0
    %v2121 = vadd.f32 %v2072, %v2120
    %2122 = vdwg.mxu0
    %v2123 = vmax.f32 %v2084, 0.0
    %v2124 = vmax.f32 %v2086, 0.0
    %v2125 = vmax.f32 %v2089, 0.0
    %v2126 = vmax.f32 %v2091, 0.0
    %v2127 = vmax.f32 %v2094, 0.0
    %v2128 = vmax.f32 %v2096, 0.0
    %v2129 = vmax.f32 %v2099, 0.0
    %v2130 = vmax.f32 %v2101, 0.0
    %v2131 = vmax.f32 %v2104, 0.0
    %v2132 = vmax.f32 %v2106, 0.0
    %v2133 = vmax.f32 %v2109, 0.0
    %v2134 = vmax.f32 %v2111, 0.0
    %v2135 = vmax.f32 %v2114, 0.0
    %v2136 = vmax.f32 %v2116, 0.0
    %v2137 = vmax.f32 %v2119, 0.0
    %v2138 = vmax.f32 %v2121, 0.0
    %v2139 = vpack.c.bf16 %v2124, %v2123
    %v2140 = vpack.c.bf16 %v2126, %v2125
    %v2141 = vpack.c.bf16 %v2128, %v2127
    %v2142 = vpack.c.bf16 %v2130, %v2129
    %v2143 = vpack.c.bf16 %v2132, %v2131
    %v2144 = vpack.c.bf16 %v2134, %v2133
    %v2145 = vpack.c.bf16 %v2136, %v2135
    %v2146 = vpack.c.bf16 %v2138, %v2137
    %v2147 = vld [vmem:[%s7] sm:$0xf]
    %v2148 = vld [vmem:[%s7 + $0x4] sm:$0xf]
    %v2149 = vld [vmem:[%s7 + $0x8] sm:$0xf]
    %v2150 = vld [vmem:[%s7 + $0xc] sm:$0xf]
    %v2151 = vld [vmem:[%s7 + $0x10] sm:$0xf]
    %v2152 = vld [vmem:[%s7 + $0x14] sm:$0xf]
    %v2153 = vld [vmem:[%s7 + $0x18] sm:$0xf]
    %v2154 = vld [vmem:[%s7 + $0x1c] sm:$0xf]
    %v2155 = vld [vmem:[%s7 + $0x20] sm:$0xf]
    %v2156 = vld [vmem:[%s7 + $0x24] sm:$0xf]
    %v2157 = vld [vmem:[%s7 + $0x28] sm:$0xf]
    %v2158 = vld [vmem:[%s7 + $0x2c] sm:$0xf]
    %v2159 = vld [vmem:[%s7 + $0x30] sm:$0xf]
    %v2160 = vld [vmem:[%s7 + $0x34] sm:$0xf]
    %v2161 = vld [vmem:[%s7 + $0x38] sm:$0xf]
    %v2162 = vld [vmem:[%s7 + $0x3c] sm:$0xf]
    %v2164 = vperm.slane %v68, 0
    %v2182 = vunpack.c.l.b16 %v2147
    %v2183 = vunpack.c.l.b16 %v2148
    %v2184 = vunpack.c.l.b16 %v2149
    %v2185 = vunpack.c.l.b16 %v2150
    %v2186 = vunpack.c.l.b16 %v2151
    %v2187 = vunpack.c.l.b16 %v2152
    %v2188 = vunpack.c.l.b16 %v2153
    %v2189 = vunpack.c.l.b16 %v2154
    %v2190 = vunpack.c.l.b16 %v2155
    %v2191 = vunpack.c.l.b16 %v2156
    %v2192 = vunpack.c.l.b16 %v2157
    %v2193 = vunpack.c.l.b16 %v2158
    %v2194 = vunpack.c.l.b16 %v2159
    %v2195 = vunpack.c.l.b16 %v2160
    %v2196 = vunpack.c.l.b16 %v2161
    %v2197 = vunpack.c.l.b16 %v2162
    %v2198 = vpack.c.b16 %v2183, %v2182
    %v2199 = vpack.c.b16 %v2185, %v2184
    %v2200 = vpack.c.b16 %v2187, %v2186
    %v2201 = vpack.c.b16 %v2189, %v2188
    %v2202 = vpack.c.b16 %v2191, %v2190
    %v2203 = vpack.c.b16 %v2193, %v2192
    %v2204 = vpack.c.b16 %v2195, %v2194
    %v2205 = vpack.c.b16 %v2197, %v2196
    %2214 = vmatpush.bf16.msra.mxu0 %v2205
    %2215 = vmatpush.bf16.msra.mxu0 %v2204
    %2216 = vmatpush.bf16.msra.mxu0 %v2203
    %2217 = vmatpush.bf16.msra.mxu0 %v2202
    %2218 = vmatpush.bf16.msra.mxu0 %v2201
    %2219 = vmatpush.bf16.msra.mxu0 %v2200
    %2220 = vmatpush.bf16.msra.mxu0 %v2199
    %2221 = vmatpush.bf16.msra.mxu0 %v2198
    %2222 = vmatmul.bf16.gmra.mxu0 %v2139
    %v2223 = vpop.f32.mrf.mxu0
    %v2224 = vadd.f32 %v2164, %v2223
    %v2225 = vpop.f32.mrf.mxu0
    %v2226 = vadd.f32 %v2164, %v2225
    %2227 = vmatmul.bf16.gmra.mxu0 %v2140
    %v2228 = vpop.f32.mrf.mxu0
    %v2229 = vadd.f32 %v2164, %v2228
    %v2230 = vpop.f32.mrf.mxu0
    %v2231 = vadd.f32 %v2164, %v2230
    %2232 = vmatmul.bf16.gmra.mxu0 %v2141
    %v2233 = vpop.f32.mrf.mxu0
    %v2234 = vadd.f32 %v2164, %v2233
    %v2235 = vpop.f32.mrf.mxu0
    %v2236 = vadd.f32 %v2164, %v2235
    %2237 = vmatmul.bf16.gmra.mxu0 %v2142
    %v2238 = vpop.f32.mrf.mxu0
    %v2239 = vadd.f32 %v2164, %v2238
    %v2240 = vpop.f32.mrf.mxu0
    %v2241 = vadd.f32 %v2164, %v2240
    %2242 = vmatmul.bf16.gmra.mxu0 %v2143
    %v2243 = vpop.f32.mrf.mxu0
    %v2244 = vadd.f32 %v2164, %v2243
    %v2245 = vpop.f32.mrf.mxu0
    %v2246 = vadd.f32 %v2164, %v2245
    %2247 = vmatmul.bf16.gmra.mxu0 %v2144
    %v2248 = vpop.f32.mrf.mxu0
    %v2249 = vadd.f32 %v2164, %v2248
    %v2250 = vpop.f32.mrf.mxu0
    %v2251 = vadd.f32 %v2164, %v2250
    %2252 = vmatmul.bf16.gmra.mxu0 %v2145
    %v2253 = vpop.f32.mrf.mxu0
    %v2254 = vadd.f32 %v2164, %v2253
    %v2255 = vpop.f32.mrf.mxu0
    %v2256 = vadd.f32 %v2164, %v2255
    %2257 = vmatmul.bf16.gmra.mxu0 %v2146
    %v2258 = vpop.f32.mrf.mxu0
    %v2259 = vadd.f32 %v2164, %v2258
    %v2260 = vpop.f32.mrf.mxu0
    %v2261 = vadd.f32 %v2164, %v2260
    %2262 = vdwg.mxu0
    %vm2263 = vcmask 261120
    %2264 = vst.msk [vmem:[%s9] sm:$0xff] %vm2263, %v2224
    %2265 = vst.msk [vmem:[%s9 + $0x8] sm:$0xff] %vm2263, %v2226
    %2266 = vst.msk [vmem:[%s9 + $0x10] sm:$0xff] %vm2263, %v2229
    %2267 = vst.msk [vmem:[%s9 + $0x18] sm:$0xff] %vm2263, %v2231
    %2268 = vst.msk [vmem:[%s9 + $0x20] sm:$0xff] %vm2263, %v2234
    %2269 = vst.msk [vmem:[%s9 + $0x28] sm:$0xff] %vm2263, %v2236
    %2270 = vst.msk [vmem:[%s9 + $0x30] sm:$0xff] %vm2263, %v2239
    %2271 = vst.msk [vmem:[%s9 + $0x38] sm:$0xff] %vm2263, %v2241
    %2272 = vst.msk [vmem:[%s9 + $0x40] sm:$0xff] %vm2263, %v2244
    %2273 = vst.msk [vmem:[%s9 + $0x48] sm:$0xff] %vm2263, %v2246
    %2274 = vst.msk [vmem:[%s9 + $0x50] sm:$0xff] %vm2263, %v2249
    %2275 = vst.msk [vmem:[%s9 + $0x58] sm:$0xff] %vm2263, %v2251
    %2276 = vst.msk [vmem:[%s9 + $0x60] sm:$0xff] %vm2263, %v2254
    %2277 = vst.msk [vmem:[%s9 + $0x68] sm:$0xff] %vm2263, %v2256
    %2278 = vst.msk [vmem:[%s9 + $0x70] sm:$0xff] %vm2263, %v2259
    %2279 = vst.msk [vmem:[%s9 + $0x78] sm:$0xff] %vm2263, %v2261
    // Predicated region
    $region46: #{simple_broker_drl_forward.1} parent=1 // pred_check
      _
    $region47: #{simple_broker_drl_forward.1} parent=1 // pred_check_branch
      %2281 = sbr.rel (0) target = $region49
    $region48: #{simple_broker_drl_forward.1} parent=1 // pred_region
      _
    $region49: #{simple_broker_drl_forward.1} parent=1 // pred_fallthru
      _
    // Predicated region
    $region50: #{simple_broker_drl_forward.1} parent=1 // pred_check
      _
    $region51: #{simple_broker_drl_forward.1} parent=1 // pred_check_branch
      %2283 = sbr.rel (0) target = $region53
    $region52: #{simple_broker_drl_forward.1} parent=1 // pred_region
      _
    $region53: #{simple_broker_drl_forward.1} parent=1 // pred_fallthru
      _
    %2284 = vsyncpa [#allocation3], 1
    %2285 = vsyncpa [#allocation5], 1

</llo_original>
